<compile_context>
chip_gen: v5e
topology: v5e:2x2
jax: 0.10.0
libtpu: 0.0.40
codegen_flags: <defaults>
</compile_context>

<pallas_src>
import functools

import jax
import jax.numpy as jnp
from jax import lax
from jax.experimental import pallas as pl
from jax.experimental.pallas import tpu as pltpu

EPS = 1e-6      # SharedSpatialAttention eps
BN_EPS = 1e-5   # BatchNorm2d eps

_OFFSETS = tuple((dy, dx) for dy in (-1, 0, 1) for dx in (-1, 0, 1))


# --------------------------- fused Pallas kernel ------------------------------

def _ssa_kernel(x_ref, wqkv_ref, bqkv_ref, wl1_ref, hl1_ref,
                woc_ref, hoc_ref, mask_ref, o_ref, *, H, W, Cq, Co, ips):
    N = H * W
    x16 = x_ref[...].astype(jnp.bfloat16)                  # (Cin, ips*N) bf16

    # ---- ONE stacked matmul: Q / K / V / l2(1x1 conv, BN folded) --------------
    qkv = jnp.dot(wqkv_ref[...], x16,
                  preferred_element_type=jnp.float32) + bqkv_ref[...]  # (2Cq+2Co, Nb)
    q = qkv[:Cq, :]
    k = qkv[Cq:2 * Cq, :]
    v = qkv[2 * Cq:2 * Cq + Co, :]
    l2_out = jnp.maximum(qkv[2 * Cq + Co:, :], 0.0)        # BN already folded in

    # ---- l1: 3x3 conv (pad 1) as ONE K=9*Cin matmul over in-kernel im2col ----
    m = mask_ref[...]                                      # (9, Nb) bf16 masks
    taps = []
    for t, (dy, dx) in enumerate(_OFFSETS):
        shift = dy * W + dx
        rolled = x16 if shift == 0 else jnp.roll(x16, -shift, axis=1)
        taps.append(rolled * m[t])                         # mask zeros boundary taps
    im2col = jnp.concatenate(taps, axis=0)                 # (9*Cin, Nb) bf16
    l1_out = jnp.maximum(
        jnp.dot(wl1_ref[...], im2col, preferred_element_type=jnp.float32)
        + hl1_ref[...], 0.0)                               # (Co, Nb), BN folded

    # ---- linear attention (reductions are per-image -> short unrolled loop) ---
    att_cols = []
    for b in range(ips):
        s = b * N
        qb = q[:, s:s + N]
        kb = k[:, s:s + N]
        vb = v[:, s:s + N]
        # TODO(synk): no epsilon under rsqrt (matches the PyTorch reference);
        # add a tiny eps for robustness on real data.
        qn = qb * lax.rsqrt(jnp.sum(qb * qb, axis=0, keepdims=True))
        kn = kb * lax.rsqrt(jnp.sum(kb * kb, axis=0, keepdims=True))
        sum_k = jnp.sum(kn, axis=1, keepdims=True) + EPS                 # (Cq, 1)
        ts = pl.reciprocal(float(N) + jnp.sum(qn * sum_k, axis=0, keepdims=True),
                           approx=True)                                  # (1, N)
        v_sum = jnp.sum(vb, axis=1, keepdims=True)                       # (Co, 1)
        # matrix[m, c] = sum_n kn[m, n] * v[c, n]
        matrix = lax.dot_general(kn.astype(jnp.bfloat16), vb.astype(jnp.bfloat16),
                                 (((1,), (1,)), ((), ())),
                                 preferred_element_type=jnp.float32)     # (Cq, Co)
        # msum[c, n] = v_sum[c] + sum_m matrix[m, c] * qn[m, n]
        msum = v_sum + lax.dot_general(matrix.astype(jnp.bfloat16),
                                       qn.astype(jnp.bfloat16),
                                       (((0,), (0,)), ((), ())),
                                       preferred_element_type=jnp.float32)  # (Co, N)
        att_cols.append(msum * ts)
    att = att_cols[0] if ips == 1 else jnp.concatenate(att_cols, axis=1)  # (Co, Nb)

    # ---- residual adds + out_cov 1x1 conv (BN folded) + ReLU ------------------
    pre = (att + l1_out + l2_out).astype(jnp.bfloat16)
    oc = jnp.dot(woc_ref[...], pre, preferred_element_type=jnp.float32) + hoc_ref[...]
    o_ref[...] = jnp.maximum(oc, 0.0).astype(o_ref.dtype)


# --------------------------- wrapper ------------------------------------------

def shared_spatial_attention(p, x, images_per_step=None):
    """images_per_step=None -> whole batch per grid step (best on 1-TC v5e/v6e).
    On v7x with B>=2 pass images_per_step=1 so grid=(B,) 'parallel' uses both TCs."""
    B, Cin, H, W = x.shape
    N = H * W
    Cq = p["wq"].shape[0]
    Co = p["wv"].shape[0]
    ips = B if images_per_step is None else images_per_step
    assert B % ips == 0
    Nb = ips * N

    # channel-major layout, images concatenated along lanes -> (Cin, B*N)
    xf = x.reshape(B, Cin, N).transpose(1, 0, 2).reshape(Cin, B * N)

    def fold(w2d, b, scale, shift):
        # conv -> BN:  y = (W x + b) * scale + shift  ==  (scale*W) x + (scale*b + shift)
        return ((w2d * scale[:, None]).astype(jnp.bfloat16),
                (b * scale + shift).reshape(-1, 1))

    # stacked Q/K/V + BN-folded l2 (all 1x1 convs -> one matmul)
    wl2f, hl2f = fold(p["l2"]["w"].reshape(Co, Cin), p["l2"]["b"],
                      p["l2"]["scale"], p["l2"]["shift"])
    wqkv = jnp.concatenate([p["wq"].reshape(Cq, Cin).astype(jnp.bfloat16),
                            p["wk"].reshape(Cq, Cin).astype(jnp.bfloat16),
                            p["wv"].reshape(Co, Cin).astype(jnp.bfloat16),
                            wl2f], axis=0)                       # (2Cq+2Co, Cin)
    bqkv = jnp.concatenate([p["bq"].reshape(-1, 1), p["bk"].reshape(-1, 1),
                            p["bv"].reshape(-1, 1), hl2f], axis=0)

    # l1 3x3 weight -> (Co, 9*Cin), column order matches in-kernel im2col taps
    wl1_flat = jnp.transpose(p["l1"]["w"], (0, 2, 3, 1)).reshape(Co, 9 * Cin)
    wl1f, hl1f = fold(wl1_flat, p["l1"]["b"], p["l1"]["scale"], p["l1"]["shift"])

    wocf, hocf = fold(p["out_cov"]["w"].reshape(Co, Co), p["out_cov"]["b"],
                      p["out_cov"]["scale"], p["out_cov"]["shift"])

    # 9 boundary masks, precomputed once on the host (tiny bf16 constant)
    idx = jnp.arange(N)
    row = idx // W
    col = idx % W
    mask = jnp.stack([((row + dy >= 0) & (row + dy < H) &
                       (col + dx >= 0) & (col + dx < W)).astype(jnp.bfloat16)
                      for dy, dx in _OFFSETS], axis=0)           # (9, N)
    mask = jnp.tile(mask, (1, ips))                              # (9, ips*N)

    consts = (wqkv, bqkv, wl1f, hl1f, wocf, hocf, mask)
    in_specs = [pl.BlockSpec((Cin, Nb), lambda g: (0, g))]
    in_specs += [pl.BlockSpec(c.shape, lambda g: (0, 0)) for c in consts]

    out = pl.pallas_call(
        functools.partial(_ssa_kernel, H=H, W=W, Cq=Cq, Co=Co, ips=ips),
        out_shape=jax.ShapeDtypeStruct((Co, B * N), jnp.float32),
        grid=(B // ips,),
        in_specs=in_specs,
        out_specs=pl.BlockSpec((Co, Nb), lambda g: (0, g)),
        compiler_params=pltpu.CompilerParams(dimension_semantics=("parallel",)),
    )(xf, *consts)
    return out.reshape(Co, B, N).transpose(1, 0, 2).reshape(B, Co, H, W)


# --------------------------- pure-JAX reference -------------------------------

def _ref_conv(x, w, b, pad=0):
    out = lax.conv_general_dilated(x, w, (1, 1), [(pad, pad), (pad, pad)],
                                   dimension_numbers=("NCHW", "OIHW", "NCHW"))
    return out + b[None, :, None, None]


def _ref_bn_relu(x, scale, shift):
    return jnp.maximum(x * scale[None, :, None, None] + shift[None, :, None, None], 0.0)


def _ref_l2norm(x):  # (B, C, N), normalise over C
    return x / jnp.sqrt(jnp.sum(x * x, axis=1, keepdims=True))


def ref_shared_spatial_attention(p, x):
    B, _, H, W = x.shape
    N = H * W
    Co = p["wv"].shape[0]
    Q = _ref_conv(x, p["wq"], p["bq"]).reshape(B, -1, N)
    K = _ref_conv(x, p["wk"], p["bk"]).reshape(B, -1, N)
    V = _ref_conv(x, p["wv"], p["bv"]).reshape(B, -1, N)
    Qn = jnp.transpose(_ref_l2norm(Q), (0, 2, 1))            # (B, N, Cq)
    Kn = _ref_l2norm(K)                                      # (B, Cq, N)
    ts = 1.0 / (N + jnp.einsum("bnc,bc->bn", Qn, jnp.sum(Kn, axis=-1) + EPS))
    vs = jnp.sum(V, axis=-1)[:, :, None]                     # (B, Co, 1)
    mat = jnp.einsum("bmn,bcn->bmc", Kn, V)                  # (B, Cq, Co)
    msum = vs + jnp.einsum("bnm,bmc->bcn", Qn, mat)          # (B, Co, N)
    wv = (msum * ts[:, None, :]).reshape(B, Co, H, W)
    l1 = _ref_bn_relu(_ref_conv(x, p["l1"]["w"], p["l1"]["b"], pad=1),
                      p["l1"]["scale"], p["l1"]["shift"])
    l2 = _ref_bn_relu(_ref_conv(x, p["l2"]["w"], p["l2"]["b"]),
                      p["l2"]["scale"], p["l2"]["shift"])
    pre = wv + l1 + l2
    oc = p["out_cov"]
    return _ref_bn_relu(_ref_conv(pre, oc["w"], oc["b"]), oc["scale"], oc["shift"])


# --------------------------- parameter init -----------------------------------

def init_params(key, cin, cout):
    keys = iter(jax.random.split(key, 32))

    def conv(co, ci, k):
        w = jax.random.normal(next(keys), (co, ci, k, k), jnp.float32) * 0.1
        b = jax.random.normal(next(keys), (co,), jnp.float32) * 0.05
        return w, b

    def bn(c):
        g = 1.0 + 0.1 * jax.random.normal(next(keys), (c,), jnp.float32)
        beta = 0.1 * jax.random.normal(next(keys), (c,), jnp.float32)
        mean = 0.1 * jax.random.normal(next(keys), (c,), jnp.float32)
        var = 0.5 + jnp.abs(jax.random.normal(next(keys), (c,), jnp.float32))
        scale = g / jnp.sqrt(var + BN_EPS)
        shift = beta - mean * scale
        return scale, shift

    cq = cout // 4
    wq, bq = conv(cq, cin, 1)
    wk, bk = conv(cq, cin, 1)
    wv, bv = conv(cout, cin, 1)
    l1w, l1b = conv(cout, cin, 3); l1s, l1h = bn(cout)
    l2w, l2b = conv(cout, cin, 1); l2s, l2h = bn(cout)
    ocw, ocb = conv(cout, cout, 1); ocs, och = bn(cout)

    return {
        "wq": wq, "bq": bq, "wk": wk, "bk": bk, "wv": wv, "bv": bv,
        "l1": {"w": l1w, "b": l1b, "scale": l1s, "shift": l1h},
        "l2": {"w": l2w, "b": l2b, "scale": l2s, "shift": l2h},
        "out_cov": {"w": ocw, "b": ocb, "scale": ocs, "shift": och},
    }


# --------------------------- main ----------------------------------------------

if __name__ == "__main__":
    key = jax.random.PRNGKey(0)
    kx, kp = jax.random.split(key)
    B, Cin, Co, H, W = 2, 16, 32, 16, 16      # N = 256 (lane-dense)
    x = jax.random.normal(kx, (B, Cin, H, W), jnp.float32)
    params = init_params(kp, Cin, Co)

    ref = jax.block_until_ready(ref_shared_spatial_attention(params, x))

    # default: batch-widened single grid step (v5e/v6e single-TC layout)
    out = jax.block_until_ready(shared_spatial_attention(params, x))
    assert out.shape == (B, Co, H, W)
    err0 = float(jnp.max(jnp.abs(out - ref)))
    assert bool(jnp.allclose(out, ref, rtol=5e-2, atol=5e-2)), err0

    # v7x-style path: one image per grid step, "parallel" batch axis
    out1 = jax.block_until_ready(shared_spatial_attention(params, x, images_per_step=1))
    err1 = float(jnp.max(jnp.abs(out1 - ref)))
    assert bool(jnp.allclose(out1, ref, rtol=5e-2, atol=5e-2)), err1

    print("KERNEL_OK")
</pallas_src>

<mosaic_0001>
module attributes {stable_mosaic.version = 11 : i64} {
  func.func @_ssa_kernel(%arg0: i32, %arg1: memref<16x512xf32, #tpu.memory_space<vmem>>, %arg2: memref<80x16xbf16, #tpu.memory_space<vmem>>, %arg3: memref<80x1xf32, #tpu.memory_space<vmem>>, %arg4: memref<32x144xbf16, #tpu.memory_space<vmem>>, %arg5: memref<32x1xf32, #tpu.memory_space<vmem>>, %arg6: memref<32x32xbf16, #tpu.memory_space<vmem>>, %arg7: memref<32x1xf32, #tpu.memory_space<vmem>>, %arg8: memref<9x512xbf16, #tpu.memory_space<vmem>>, %arg9: memref<32x512xf32, #tpu.memory_space<vmem>>) attributes {dimension_semantics = [#tpu.dimension_semantics<parallel>], iteration_bounds = array<i64: 1>, scalar_prefetch = 0 : i64, scratch_operands = 0 : i64, tpu.core_type = #tpu.core_type<tc>, window_params = [{transform_indices = @transform_0, window_bounds = array<i64: 16, 512>}, {pipeline_mode = #tpu.pipeline_mode<synchronous>, transform_indices = @transform_1, window_bounds = array<i64: 80, 16>}, {pipeline_mode = #tpu.pipeline_mode<synchronous>, transform_indices = @transform_2, window_bounds = array<i64: 80, 1>}, {pipeline_mode = #tpu.pipeline_mode<synchronous>, transform_indices = @transform_3, window_bounds = array<i64: 32, 144>}, {pipeline_mode = #tpu.pipeline_mode<synchronous>, transform_indices = @transform_4, window_bounds = array<i64: 32, 1>}, {pipeline_mode = #tpu.pipeline_mode<synchronous>, transform_indices = @transform_5, window_bounds = array<i64: 32, 32>}, {pipeline_mode = #tpu.pipeline_mode<synchronous>, transform_indices = @transform_6, window_bounds = array<i64: 32, 1>}, {pipeline_mode = #tpu.pipeline_mode<synchronous>, transform_indices = @transform_7, window_bounds = array<i64: 9, 512>}, {transform_indices = @transform_8, window_bounds = array<i64: 32, 512>}]} {
    %c0 = arith.constant 0 : index
    %c0_0 = arith.constant 0 : index
    %0 = vector.load %arg1[%c0, %c0_0] : memref<16x512xf32, #tpu.memory_space<vmem>>, vector<16x512xf32>
    %1 = arith.truncf %0 : vector<16x512xf32> to vector<16x512xbf16>
    %c0_1 = arith.constant 0 : index
    %c0_2 = arith.constant 0 : index
    %2 = vector.load %arg2[%c0_1, %c0_2] : memref<80x16xbf16, #tpu.memory_space<vmem>>, vector<80x16xbf16>
    %cst = arith.constant dense<0.000000e+00> : vector<80x512xf32>
    %3 = tpu.matmul %2, %1, %cst {dimension_numbers = #tpu.dot_dimension_numbers<[1], [0], [0], [1], [0, 0, 1, 1], [], []>} : vector<80x16xbf16>, vector<16x512xbf16>, vector<80x512xf32> -> vector<80x512xf32>
    %c0_3 = arith.constant 0 : index
    %c0_4 = arith.constant 0 : index
    %4 = vector.load %arg3[%c0_3, %c0_4] : memref<80x1xf32, #tpu.memory_space<vmem>>, vector<80x1xf32>
    %5 = vector.broadcast %4 : vector<80x1xf32> to vector<80x512xf32>
    %6 = arith.addf %3, %5 : vector<80x512xf32>
    %7 = vector.extract_strided_slice %6 {offsets = [0, 0], sizes = [8, 512], strides = [1, 1]} : vector<80x512xf32> to vector<8x512xf32>
    %8 = vector.extract_strided_slice %6 {offsets = [8, 0], sizes = [8, 512], strides = [1, 1]} : vector<80x512xf32> to vector<8x512xf32>
    %9 = vector.extract_strided_slice %6 {offsets = [16, 0], sizes = [32, 512], strides = [1, 1]} : vector<80x512xf32> to vector<32x512xf32>
    %10 = vector.extract_strided_slice %6 {offsets = [48, 0], sizes = [32, 512], strides = [1, 1]} : vector<80x512xf32> to vector<32x512xf32>
    %cst_5 = arith.constant 0.000000e+00 : f32
    %11 = vector.broadcast %cst_5 : f32 to vector<32x512xf32>
    %12 = arith.maximumf %10, %11 : vector<32x512xf32>
    %c0_6 = arith.constant 0 : index
    %c0_7 = arith.constant 0 : index
    %13 = vector.load %arg8[%c0_6, %c0_7] : memref<9x512xbf16, #tpu.memory_space<vmem>>, vector<9x512xbf16>
    %14 = vector.extract_strided_slice %1 {offsets = [0, 495], sizes = [16, 17], strides = [1, 1]} : vector<16x512xbf16> to vector<16x17xbf16>
    %15 = vector.extract_strided_slice %1 {offsets = [0, 0], sizes = [16, 495], strides = [1, 1]} : vector<16x512xbf16> to vector<16x495xbf16>
    %16 = tpu.concatenate %14, %15 in 1 : vector<16x17xbf16>, vector<16x495xbf16> -> vector<16x512xbf16>
    %17 = vector.extract_strided_slice %13 {offsets = [0, 0], sizes = [1, 512], strides = [1, 1]} : vector<9x512xbf16> to vector<1x512xbf16>
    %18 = vector.shape_cast %17 : vector<1x512xbf16> to vector<512xbf16>
    %19 = vector.shape_cast %18 : vector<512xbf16> to vector<1x512xbf16>
    %20 = vector.broadcast %19 : vector<1x512xbf16> to vector<16x512xbf16>
    %21 = arith.mulf %16, %20 : vector<16x512xbf16>
    %22 = vector.extract_strided_slice %1 {offsets = [0, 496], sizes = [16, 16], strides = [1, 1]} : vector<16x512xbf16> to vector<16x16xbf16>
    %23 = vector.extract_strided_slice %1 {offsets = [0, 0], sizes = [16, 496], strides = [1, 1]} : vector<16x512xbf16> to vector<16x496xbf16>
    %24 = tpu.concatenate %22, %23 in 1 : vector<16x16xbf16>, vector<16x496xbf16> -> vector<16x512xbf16>
    %25 = vector.extract_strided_slice %13 {offsets = [1, 0], sizes = [1, 512], strides = [1, 1]} : vector<9x512xbf16> to vector<1x512xbf16>
    %26 = vector.shape_cast %25 : vector<1x512xbf16> to vector<512xbf16>
    %27 = vector.shape_cast %26 : vector<512xbf16> to vector<1x512xbf16>
    %28 = vector.broadcast %27 : vector<1x512xbf16> to vector<16x512xbf16>
    %29 = arith.mulf %24, %28 : vector<16x512xbf16>
    %30 = vector.extract_strided_slice %1 {offsets = [0, 497], sizes = [16, 15], strides = [1, 1]} : vector<16x512xbf16> to vector<16x15xbf16>
    %31 = vector.extract_strided_slice %1 {offsets = [0, 0], sizes = [16, 497], strides = [1, 1]} : vector<16x512xbf16> to vector<16x497xbf16>
    %32 = tpu.concatenate %30, %31 in 1 : vector<16x15xbf16>, vector<16x497xbf16> -> vector<16x512xbf16>
    %33 = vector.extract_strided_slice %13 {offsets = [2, 0], sizes = [1, 512], strides = [1, 1]} : vector<9x512xbf16> to vector<1x512xbf16>
    %34 = vector.shape_cast %33 : vector<1x512xbf16> to vector<512xbf16>
    %35 = vector.shape_cast %34 : vector<512xbf16> to vector<1x512xbf16>
    %36 = vector.broadcast %35 : vector<1x512xbf16> to vector<16x512xbf16>
    %37 = arith.mulf %32, %36 : vector<16x512xbf16>
    %38 = vector.extract_strided_slice %1 {offsets = [0, 511], sizes = [16, 1], strides = [1, 1]} : vector<16x512xbf16> to vector<16x1xbf16>
    %39 = vector.extract_strided_slice %1 {offsets = [0, 0], sizes = [16, 511], strides = [1, 1]} : vector<16x512xbf16> to vector<16x511xbf16>
    %40 = tpu.concatenate %38, %39 in 1 : vector<16x1xbf16>, vector<16x511xbf16> -> vector<16x512xbf16>
    %41 = vector.extract_strided_slice %13 {offsets = [3, 0], sizes = [1, 512], strides = [1, 1]} : vector<9x512xbf16> to vector<1x512xbf16>
    %42 = vector.shape_cast %41 : vector<1x512xbf16> to vector<512xbf16>
    %43 = vector.shape_cast %42 : vector<512xbf16> to vector<1x512xbf16>
    %44 = vector.broadcast %43 : vector<1x512xbf16> to vector<16x512xbf16>
    %45 = arith.mulf %40, %44 : vector<16x512xbf16>
    %46 = vector.extract_strided_slice %13 {offsets = [4, 0], sizes = [1, 512], strides = [1, 1]} : vector<9x512xbf16> to vector<1x512xbf16>
    %47 = vector.shape_cast %46 : vector<1x512xbf16> to vector<512xbf16>
    %48 = vector.shape_cast %47 : vector<512xbf16> to vector<1x512xbf16>
    %49 = vector.broadcast %48 : vector<1x512xbf16> to vector<16x512xbf16>
    %50 = arith.mulf %1, %49 : vector<16x512xbf16>
    %51 = vector.extract_strided_slice %1 {offsets = [0, 1], sizes = [16, 511], strides = [1, 1]} : vector<16x512xbf16> to vector<16x511xbf16>
    %52 = vector.extract_strided_slice %1 {offsets = [0, 0], sizes = [16, 1], strides = [1, 1]} : vector<16x512xbf16> to vector<16x1xbf16>
    %53 = tpu.concatenate %51, %52 in 1 : vector<16x511xbf16>, vector<16x1xbf16> -> vector<16x512xbf16>
    %54 = vector.extract_strided_slice %13 {offsets = [5, 0], sizes = [1, 512], strides = [1, 1]} : vector<9x512xbf16> to vector<1x512xbf16>
    %55 = vector.shape_cast %54 : vector<1x512xbf16> to vector<512xbf16>
    %56 = vector.shape_cast %55 : vector<512xbf16> to vector<1x512xbf16>
    %57 = vector.broadcast %56 : vector<1x512xbf16> to vector<16x512xbf16>
    %58 = arith.mulf %53, %57 : vector<16x512xbf16>
    %59 = vector.extract_strided_slice %1 {offsets = [0, 15], sizes = [16, 497], strides = [1, 1]} : vector<16x512xbf16> to vector<16x497xbf16>
    %60 = vector.extract_strided_slice %1 {offsets = [0, 0], sizes = [16, 15], strides = [1, 1]} : vector<16x512xbf16> to vector<16x15xbf16>
    %61 = tpu.concatenate %59, %60 in 1 : vector<16x497xbf16>, vector<16x15xbf16> -> vector<16x512xbf16>
    %62 = vector.extract_strided_slice %13 {offsets = [6, 0], sizes = [1, 512], strides = [1, 1]} : vector<9x512xbf16> to vector<1x512xbf16>
    %63 = vector.shape_cast %62 : vector<1x512xbf16> to vector<512xbf16>
    %64 = vector.shape_cast %63 : vector<512xbf16> to vector<1x512xbf16>
    %65 = vector.broadcast %64 : vector<1x512xbf16> to vector<16x512xbf16>
    %66 = arith.mulf %61, %65 : vector<16x512xbf16>
    %67 = vector.extract_strided_slice %1 {offsets = [0, 16], sizes = [16, 496], strides = [1, 1]} : vector<16x512xbf16> to vector<16x496xbf16>
    %68 = vector.extract_strided_slice %1 {offsets = [0, 0], sizes = [16, 16], strides = [1, 1]} : vector<16x512xbf16> to vector<16x16xbf16>
    %69 = tpu.concatenate %67, %68 in 1 : vector<16x496xbf16>, vector<16x16xbf16> -> vector<16x512xbf16>
    %70 = vector.extract_strided_slice %13 {offsets = [7, 0], sizes = [1, 512], strides = [1, 1]} : vector<9x512xbf16> to vector<1x512xbf16>
    %71 = vector.shape_cast %70 : vector<1x512xbf16> to vector<512xbf16>
    %72 = vector.shape_cast %71 : vector<512xbf16> to vector<1x512xbf16>
    %73 = vector.broadcast %72 : vector<1x512xbf16> to vector<16x512xbf16>
    %74 = arith.mulf %69, %73 : vector<16x512xbf16>
    %75 = vector.extract_strided_slice %1 {offsets = [0, 17], sizes = [16, 495], strides = [1, 1]} : vector<16x512xbf16> to vector<16x495xbf16>
    %76 = vector.extract_strided_slice %1 {offsets = [0, 0], sizes = [16, 17], strides = [1, 1]} : vector<16x512xbf16> to vector<16x17xbf16>
    %77 = tpu.concatenate %75, %76 in 1 : vector<16x495xbf16>, vector<16x17xbf16> -> vector<16x512xbf16>
    %78 = vector.extract_strided_slice %13 {offsets = [8, 0], sizes = [1, 512], strides = [1, 1]} : vector<9x512xbf16> to vector<1x512xbf16>
    %79 = vector.shape_cast %78 : vector<1x512xbf16> to vector<512xbf16>
    %80 = vector.shape_cast %79 : vector<512xbf16> to vector<1x512xbf16>
    %81 = vector.broadcast %80 : vector<1x512xbf16> to vector<16x512xbf16>
    %82 = arith.mulf %77, %81 : vector<16x512xbf16>
    %83 = tpu.concatenate %21, %29, %37, %45, %50, %58, %66, %74, %82 in 0 : vector<16x512xbf16>, vector<16x512xbf16>, vector<16x512xbf16>, vector<16x512xbf16>, vector<16x512xbf16>, vector<16x512xbf16>, vector<16x512xbf16>, vector<16x512xbf16>, vector<16x512xbf16> -> vector<144x512xbf16>
    %c0_8 = arith.constant 0 : index
    %c0_9 = arith.constant 0 : index
    %84 = vector.load %arg4[%c0_8, %c0_9] : memref<32x144xbf16, #tpu.memory_space<vmem>>, vector<32x144xbf16>
    %cst_10 = arith.constant dense<0.000000e+00> : vector<32x512xf32>
    %85 = tpu.matmul %84, %83, %cst_10 {dimension_numbers = #tpu.dot_dimension_numbers<[1], [0], [0], [1], [0, 0, 1, 1], [], []>} : vector<32x144xbf16>, vector<144x512xbf16>, vector<32x512xf32> -> vector<32x512xf32>
    %c0_11 = arith.constant 0 : index
    %c0_12 = arith.constant 0 : index
    %86 = vector.load %arg5[%c0_11, %c0_12] : memref<32x1xf32, #tpu.memory_space<vmem>>, vector<32x1xf32>
    %87 = vector.broadcast %86 : vector<32x1xf32> to vector<32x512xf32>
    %88 = arith.addf %85, %87 : vector<32x512xf32>
    %cst_13 = arith.constant 0.000000e+00 : f32
    %89 = vector.broadcast %cst_13 : f32 to vector<32x512xf32>
    %90 = arith.maximumf %88, %89 : vector<32x512xf32>
    %91 = vector.extract_strided_slice %7 {offsets = [0, 0], sizes = [8, 256], strides = [1, 1]} : vector<8x512xf32> to vector<8x256xf32>
    %92 = vector.extract_strided_slice %8 {offsets = [0, 0], sizes = [8, 256], strides = [1, 1]} : vector<8x512xf32> to vector<8x256xf32>
    %93 = vector.extract_strided_slice %9 {offsets = [0, 0], sizes = [32, 256], strides = [1, 1]} : vector<32x512xf32> to vector<32x256xf32>
    %94 = arith.mulf %91, %91 : vector<8x256xf32>
    %cst_14 = arith.constant dense<0.000000e+00> : vector<256xf32>
    %95 = vector.multi_reduction <add>, %94, %cst_14 [0] : vector<8x256xf32> to vector<256xf32>
    %96 = vector.shape_cast %95 : vector<256xf32> to vector<1x256xf32>
    %97 = math.rsqrt %96 : vector<1x256xf32>
    %98 = vector.broadcast %97 : vector<1x256xf32> to vector<8x256xf32>
    %99 = arith.mulf %91, %98 : vector<8x256xf32>
    %100 = arith.mulf %92, %92 : vector<8x256xf32>
    %cst_15 = arith.constant dense<0.000000e+00> : vector<256xf32>
    %101 = vector.multi_reduction <add>, %100, %cst_15 [0] : vector<8x256xf32> to vector<256xf32>
    %102 = vector.shape_cast %101 : vector<256xf32> to vector<1x256xf32>
    %103 = math.rsqrt %102 : vector<1x256xf32>
    %104 = vector.broadcast %103 : vector<1x256xf32> to vector<8x256xf32>
    %105 = arith.mulf %92, %104 : vector<8x256xf32>
    %cst_16 = arith.constant dense<0.000000e+00> : vector<8xf32>
    %106 = vector.multi_reduction <add>, %105, %cst_16 [1] : vector<8x256xf32> to vector<8xf32>
    %107 = vector.shape_cast %106 : vector<8xf32> to vector<8x1xf32>
    %cst_17 = arith.constant 9.99999997E-7 : f32
    %108 = vector.broadcast %cst_17 : f32 to vector<8x1xf32>
    %109 = arith.addf %107, %108 : vector<8x1xf32>
    %110 = vector.broadcast %109 : vector<8x1xf32> to vector<8x256xf32>
    %111 = arith.mulf %99, %110 : vector<8x256xf32>
    %cst_18 = arith.constant dense<0.000000e+00> : vector<256xf32>
    %112 = vector.multi_reduction <add>, %111, %cst_18 [0] : vector<8x256xf32> to vector<256xf32>
    %113 = vector.shape_cast %112 : vector<256xf32> to vector<1x256xf32>
    %cst_19 = arith.constant 2.560000e+02 : f32
    %114 = vector.broadcast %cst_19 : f32 to vector<1x256xf32>
    %115 = arith.addf %114, %113 : vector<1x256xf32>
    %116 = tpu.reciprocal %115 {approx = true} : vector<1x256xf32> -> vector<1x256xf32>
    %cst_20 = arith.constant dense<0.000000e+00> : vector<32xf32>
    %117 = vector.multi_reduction <add>, %93, %cst_20 [1] : vector<32x256xf32> to vector<32xf32>
    %118 = vector.shape_cast %117 : vector<32xf32> to vector<32x1xf32>
    %119 = arith.truncf %105 : vector<8x256xf32> to vector<8x256xbf16>
    %120 = arith.truncf %93 : vector<32x256xf32> to vector<32x256xbf16>
    %cst_21 = arith.constant dense<0.000000e+00> : vector<8x32xf32>
    %121 = tpu.matmul %119, %120, %cst_21 {dimension_numbers = #tpu.dot_dimension_numbers<[1], [1], [0], [0], [0, 0, 1, 0], [], []>} : vector<8x256xbf16>, vector<32x256xbf16>, vector<8x32xf32> -> vector<8x32xf32>
    %122 = arith.truncf %121 : vector<8x32xf32> to vector<8x32xbf16>
    %123 = arith.truncf %99 : vector<8x256xf32> to vector<8x256xbf16>
    %cst_22 = arith.constant dense<0.000000e+00> : vector<32x256xf32>
    %124 = tpu.matmul %122, %123, %cst_22 {dimension_numbers = #tpu.dot_dimension_numbers<[0], [0], [1], [1], [0, 1, 1, 1], [], []>} : vector<8x32xbf16>, vector<8x256xbf16>, vector<32x256xf32> -> vector<32x256xf32>
    %125 = vector.broadcast %118 : vector<32x1xf32> to vector<32x256xf32>
    %126 = arith.addf %125, %124 : vector<32x256xf32>
    %127 = vector.broadcast %116 : vector<1x256xf32> to vector<32x256xf32>
    %128 = arith.mulf %126, %127 : vector<32x256xf32>
    %129 = vector.extract_strided_slice %7 {offsets = [0, 256], sizes = [8, 256], strides = [1, 1]} : vector<8x512xf32> to vector<8x256xf32>
    %130 = vector.extract_strided_slice %8 {offsets = [0, 256], sizes = [8, 256], strides = [1, 1]} : vector<8x512xf32> to vector<8x256xf32>
    %131 = vector.extract_strided_slice %9 {offsets = [0, 256], sizes = [32, 256], strides = [1, 1]} : vector<32x512xf32> to vector<32x256xf32>
    %132 = arith.mulf %129, %129 : vector<8x256xf32>
    %cst_23 = arith.constant dense<0.000000e+00> : vector<256xf32>
    %133 = vector.multi_reduction <add>, %132, %cst_23 [0] : vector<8x256xf32> to vector<256xf32>
    %134 = vector.shape_cast %133 : vector<256xf32> to vector<1x256xf32>
    %135 = math.rsqrt %134 : vector<1x256xf32>
    %136 = vector.broadcast %135 : vector<1x256xf32> to vector<8x256xf32>
    %137 = arith.mulf %129, %136 : vector<8x256xf32>
    %138 = arith.mulf %130, %130 : vector<8x256xf32>
    %cst_24 = arith.constant dense<0.000000e+00> : vector<256xf32>
    %139 = vector.multi_reduction <add>, %138, %cst_24 [0] : vector<8x256xf32> to vector<256xf32>
    %140 = vector.shape_cast %139 : vector<256xf32> to vector<1x256xf32>
    %141 = math.rsqrt %140 : vector<1x256xf32>
    %142 = vector.broadcast %141 : vector<1x256xf32> to vector<8x256xf32>
    %143 = arith.mulf %130, %142 : vector<8x256xf32>
    %cst_25 = arith.constant dense<0.000000e+00> : vector<8xf32>
    %144 = vector.multi_reduction <add>, %143, %cst_25 [1] : vector<8x256xf32> to vector<8xf32>
    %145 = vector.shape_cast %144 : vector<8xf32> to vector<8x1xf32>
    %cst_26 = arith.constant 9.99999997E-7 : f32
    %146 = vector.broadcast %cst_26 : f32 to vector<8x1xf32>
    %147 = arith.addf %145, %146 : vector<8x1xf32>
    %148 = vector.broadcast %147 : vector<8x1xf32> to vector<8x256xf32>
    %149 = arith.mulf %137, %148 : vector<8x256xf32>
    %cst_27 = arith.constant dense<0.000000e+00> : vector<256xf32>
    %150 = vector.multi_reduction <add>, %149, %cst_27 [0] : vector<8x256xf32> to vector<256xf32>
    %151 = vector.shape_cast %150 : vector<256xf32> to vector<1x256xf32>
    %cst_28 = arith.constant 2.560000e+02 : f32
    %152 = vector.broadcast %cst_28 : f32 to vector<1x256xf32>
    %153 = arith.addf %152, %151 : vector<1x256xf32>
    %154 = tpu.reciprocal %153 {approx = true} : vector<1x256xf32> -> vector<1x256xf32>
    %cst_29 = arith.constant dense<0.000000e+00> : vector<32xf32>
    %155 = vector.multi_reduction <add>, %131, %cst_29 [1] : vector<32x256xf32> to vector<32xf32>
    %156 = vector.shape_cast %155 : vector<32xf32> to vector<32x1xf32>
    %157 = arith.truncf %143 : vector<8x256xf32> to vector<8x256xbf16>
    %158 = arith.truncf %131 : vector<32x256xf32> to vector<32x256xbf16>
    %cst_30 = arith.constant dense<0.000000e+00> : vector<8x32xf32>
    %159 = tpu.matmul %157, %158, %cst_30 {dimension_numbers = #tpu.dot_dimension_numbers<[1], [1], [0], [0], [0, 0, 1, 0], [], []>} : vector<8x256xbf16>, vector<32x256xbf16>, vector<8x32xf32> -> vector<8x32xf32>
    %160 = arith.truncf %159 : vector<8x32xf32> to vector<8x32xbf16>
    %161 = arith.truncf %137 : vector<8x256xf32> to vector<8x256xbf16>
    %cst_31 = arith.constant dense<0.000000e+00> : vector<32x256xf32>
    %162 = tpu.matmul %160, %161, %cst_31 {dimension_numbers = #tpu.dot_dimension_numbers<[0], [0], [1], [1], [0, 1, 1, 1], [], []>} : vector<8x32xbf16>, vector<8x256xbf16>, vector<32x256xf32> -> vector<32x256xf32>
    %163 = vector.broadcast %156 : vector<32x1xf32> to vector<32x256xf32>
    %164 = arith.addf %163, %162 : vector<32x256xf32>
    %165 = vector.broadcast %154 : vector<1x256xf32> to vector<32x256xf32>
    %166 = arith.mulf %164, %165 : vector<32x256xf32>
    %167 = tpu.concatenate %128, %166 in 1 : vector<32x256xf32>, vector<32x256xf32> -> vector<32x512xf32>
    %168 = arith.addf %167, %90 : vector<32x512xf32>
    %169 = arith.addf %168, %12 : vector<32x512xf32>
    %170 = arith.truncf %169 : vector<32x512xf32> to vector<32x512xbf16>
    %c0_32 = arith.constant 0 : index
    %c0_33 = arith.constant 0 : index
    %171 = vector.load %arg6[%c0_32, %c0_33] : memref<32x32xbf16, #tpu.memory_space<vmem>>, vector<32x32xbf16>
    %cst_34 = arith.constant dense<0.000000e+00> : vector<32x512xf32>
    %172 = tpu.matmul %171, %170, %cst_34 {dimension_numbers = #tpu.dot_dimension_numbers<[1], [0], [0], [1], [0, 0, 1, 1], [], []>} : vector<32x32xbf16>, vector<32x512xbf16>, vector<32x512xf32> -> vector<32x512xf32>
    %c0_35 = arith.constant 0 : index
    %c0_36 = arith.constant 0 : index
    %173 = vector.load %arg7[%c0_35, %c0_36] : memref<32x1xf32, #tpu.memory_space<vmem>>, vector<32x1xf32>
    %174 = vector.broadcast %173 : vector<32x1xf32> to vector<32x512xf32>
    %175 = arith.addf %172, %174 : vector<32x512xf32>
    %cst_37 = arith.constant 0.000000e+00 : f32
    %176 = vector.broadcast %cst_37 : f32 to vector<32x512xf32>
    %177 = arith.maximumf %175, %176 : vector<32x512xf32>
    %c0_38 = arith.constant 0 : index
    %c0_39 = arith.constant 0 : index
    %178 = vector.load %arg9[%c0_38, %c0_39] : memref<32x512xf32, #tpu.memory_space<vmem>>, vector<32x512xf32>
    tpu.vector_store %arg9[%c0_38, %c0_39], %177 {strides = array<i32>} : memref<32x512xf32, #tpu.memory_space<vmem>>, vector<32x512xf32>,
    return
  }
  func.func @transform_0(%arg0: i32) -> (i32, i32) {
    %c0_i32 = arith.constant 0 : i32
    %c0_i32_0 = arith.constant 0 : i32
    return %c0_i32, %arg0 : i32, i32
  }
  func.func @transform_1(%arg0: i32) -> (i32, i32) {
    %c0_i32 = arith.constant 0 : i32
    %c0_i32_0 = arith.constant 0 : i32
    %c0_i32_1 = arith.constant 0 : i32
    return %c0_i32, %c0_i32_0 : i32, i32
  }
  func.func @transform_2(%arg0: i32) -> (i32, i32) {
    %c0_i32 = arith.constant 0 : i32
    %c0_i32_0 = arith.constant 0 : i32
    %c0_i32_1 = arith.constant 0 : i32
    return %c0_i32, %c0_i32_0 : i32, i32
  }
  func.func @transform_3(%arg0: i32) -> (i32, i32) {
    %c0_i32 = arith.constant 0 : i32
    %c0_i32_0 = arith.constant 0 : i32
    %c0_i32_1 = arith.constant 0 : i32
    return %c0_i32, %c0_i32_0 : i32, i32
  }
  func.func @transform_4(%arg0: i32) -> (i32, i32) {
    %c0_i32 = arith.constant 0 : i32
    %c0_i32_0 = arith.constant 0 : i32
    %c0_i32_1 = arith.constant 0 : i32
    return %c0_i32, %c0_i32_0 : i32, i32
  }
  func.func @transform_5(%arg0: i32) -> (i32, i32) {
    %c0_i32 = arith.constant 0 : i32
    %c0_i32_0 = arith.constant 0 : i32
    %c0_i32_1 = arith.constant 0 : i32
    return %c0_i32, %c0_i32_0 : i32, i32
  }
  func.func @transform_6(%arg0: i32) -> (i32, i32) {
    %c0_i32 = arith.constant 0 : i32
    %c0_i32_0 = arith.constant 0 : i32
    %c0_i32_1 = arith.constant 0 : i32
    return %c0_i32, %c0_i32_0 : i32, i32
  }
  func.func @transform_7(%arg0: i32) -> (i32, i32) {
    %c0_i32 = arith.constant 0 : i32
    %c0_i32_0 = arith.constant 0 : i32
    %c0_i32_1 = arith.constant 0 : i32
    return %c0_i32, %c0_i32_0 : i32, i32
  }
  func.func @transform_8(%arg0: i32) -> (i32, i32) {
    %c0_i32 = arith.constant 0 : i32
    %c0_i32_0 = arith.constant 0 : i32
    return %c0_i32, %arg0 : i32, i32
  }
}

</mosaic_0001>

<llo_original>
// kernel: tpu_custom_call.1
$region0: #{tpu_custom_call.1}
  #allocation0 [shape = 'u32[]', space=smem, size = 0x4, offset = 0x4, fixed_abs, tag = 'smem constant byte address 0x4 - core index']
  #allocation1 [shape = 'u32[72,128]{1,0:T(1,128)}', space=vmem, size = 0x9000, scoped, tag = 'internal scratch']
  %s0 = inlined_call_operand.vmem [shape: f32[16,512], index: 0, kind: input, shape index: {}]
  %s1 = inlined_call_operand.vmem [shape: bf16[80,16], index: 1, kind: input, shape index: {}]
  %s2 = inlined_call_operand.vmem [shape: f32[80,1], index: 2, kind: input, shape index: {}]
  %s3 = inlined_call_operand.vmem [shape: bf16[32,144], index: 3, kind: input, shape index: {}]
  %s4 = inlined_call_operand.vmem [shape: f32[32,1], index: 4, kind: input, shape index: {}]
  %s5 = inlined_call_operand.vmem [shape: bf16[32,32], index: 5, kind: input, shape index: {}]
  %s6 = inlined_call_operand.vmem [shape: f32[32,1], index: 6, kind: input, shape index: {}]
  %s7 = inlined_call_operand.vmem [shape: bf16[9,512], index: 7, kind: input, shape index: {}]
  %s8 = inlined_call_operand.hbm [shape: f32[32,512], index: 8, kind: output, shape index: {}]
  %s9 = sld [smem:[#allocation0]]
  $region42: #{tpu_custom_call.1} parent=0
    _
  %s11 = ssub.s32 1, %s9
  %s12 = scalar_select 0, %s11, %s9
  $region1: #{tpu_custom_call.1} parent=0
    #allocation2 [shape = 'u8[65536]{0}', space=vmem, size = 0x10000, scoped, tag = 'output window, operand 0, single buffered']
    #allocation3 [shape = 's32[1]{0}', space=sflag, size = 0x4, scoped, tag = 'scoped memory for tpu_custom_call.1']
    %13 = vsyncpa [#allocation3], 0
    // Predicated region
    $region2: #{tpu_custom_call.1} parent=1 // pred_check
      _
    $region3: #{tpu_custom_call.1} parent=1 // pred_check_branch
      %15 = sbr.rel (0) target = $region5
    $region4: #{tpu_custom_call.1} parent=1 // pred_region
      _
    $region5: #{tpu_custom_call.1} parent=1 // pred_fallthru
      _
    // Predicated region
    $region6: #{tpu_custom_call.1} parent=1 // pred_check
      _
    $region7: #{tpu_custom_call.1} parent=1 // pred_check_branch
      %17 = sbr.rel (0) target = $region9
    $region8: #{tpu_custom_call.1} parent=1 // pred_region
      _
    $region9: #{tpu_custom_call.1} parent=1 // pred_fallthru
      _
    // Predicated region
    $region10: #{tpu_custom_call.1} parent=1 // pred_check
      _
    $region11: #{tpu_custom_call.1} parent=1 // pred_check_branch
      %19 = sbr.rel (0) target = $region13
    $region12: #{tpu_custom_call.1} parent=1 // pred_region
      _
    $region13: #{tpu_custom_call.1} parent=1 // pred_fallthru
      _
    // Predicated region
    $region14: #{tpu_custom_call.1} parent=1 // pred_check
      _
    $region15: #{tpu_custom_call.1} parent=1 // pred_check_branch
      %21 = sbr.rel (0) target = $region17
    $region16: #{tpu_custom_call.1} parent=1 // pred_region
      _
    $region17: #{tpu_custom_call.1} parent=1 // pred_fallthru
      _
    // Predicated region
    $region18: #{tpu_custom_call.1} parent=1 // pred_check
      _
    $region19: #{tpu_custom_call.1} parent=1 // pred_check_branch
      %23 = sbr.rel (0) target = $region21
    $region20: #{tpu_custom_call.1} parent=1 // pred_region
      _
    $region21: #{tpu_custom_call.1} parent=1 // pred_fallthru
      _
    // Predicated region
    $region22: #{tpu_custom_call.1} parent=1 // pred_check
      _
    $region23: #{tpu_custom_call.1} parent=1 // pred_check_branch
      %25 = sbr.rel (0) target = $region25
    $region24: #{tpu_custom_call.1} parent=1 // pred_region
      _
    $region25: #{tpu_custom_call.1} parent=1 // pred_fallthru
      _
    // Predicated region
    $region26: #{tpu_custom_call.1} parent=1 // pred_check
      _
    $region27: #{tpu_custom_call.1} parent=1 // pred_check_branch
      %27 = sbr.rel (0) target = $region29
    $region28: #{tpu_custom_call.1} parent=1 // pred_region
      _
    $region29: #{tpu_custom_call.1} parent=1 // pred_fallthru
      _
    // Predicated region
    $region30: #{tpu_custom_call.1} parent=1 // pred_check
      _
    $region31: #{tpu_custom_call.1} parent=1 // pred_check_branch
      %29 = sbr.rel (0) target = $region33
    $region32: #{tpu_custom_call.1} parent=1 // pred_region
      _
    $region33: #{tpu_custom_call.1} parent=1 // pred_fallthru
      _
    %v31 = vld [vmem:[%s0] sm:$0xff]
    %v32 = vld [vmem:[%s0 + $0x8] sm:$0xff]
    %v33 = vld [vmem:[%s0 + $0x10] sm:$0xff]
    %v34 = vld [vmem:[%s0 + $0x18] sm:$0xff]
    %v35 = vld [vmem:[%s0 + $0x20] sm:$0xff]
    %v36 = vld [vmem:[%s0 + $0x28] sm:$0xff]
    %v37 = vld [vmem:[%s0 + $0x30] sm:$0xff]
    %v38 = vld [vmem:[%s0 + $0x38] sm:$0xff]
    %v39 = vpack.c.bf16 %v32, %v31
    %v40 = vpack.c.bf16 %v34, %v33
    %v41 = vpack.c.bf16 %v36, %v35
    %v42 = vpack.c.bf16 %v38, %v37
    %v43 = vld [vmem:[%s1] sm:$0xf]
    %v44 = vld [vmem:[%s1 + $0x4] sm:$0xf]
    %v45 = vld [vmem:[%s1 + $0x8] sm:$0xf]
    %v46 = vld [vmem:[%s1 + $0xc] sm:$0xf]
    %v47 = vld [vmem:[%s1 + $0x10] sm:$0xf]
    %v48 = vld [vmem:[%s1 + $0x14] sm:$0xf]
    %v49 = vld [vmem:[%s1 + $0x18] sm:$0xf]
    %v50 = vld [vmem:[%s1 + $0x1c] sm:$0xf]
    %v51 = vld [vmem:[%s1 + $0x20] sm:$0xf]
    %v52 = vld [vmem:[%s1 + $0x24] sm:$0xf]
    %v53 = vld [vmem:[%s2] sm:$0xff]
    %v54 = vld [vmem:[%s2 + $0x8] sm:$0xff]
    %v55 = vld [vmem:[%s2 + $0x10] sm:$0xff]
    %v56 = vld [vmem:[%s2 + $0x18] sm:$0xff]
    %v57 = vld [vmem:[%s2 + $0x20] sm:$0xff]
    %v58 = vld [vmem:[%s2 + $0x28] sm:$0xff]
    %v59 = vld [vmem:[%s2 + $0x30] sm:$0xff]
    %v60 = vld [vmem:[%s2 + $0x38] sm:$0xff]
    %v61 = vld [vmem:[%s2 + $0x40] sm:$0xff]
    %v62 = vld [vmem:[%s2 + $0x48] sm:$0xff]
    %64 = vset.pattern.permute.xlu0 0
    %65 = vperm.xlu0 %64, %v53
    %v66 = vpop.permute.xlu0 %65
    %69 = vset.pattern.permute.xlu0 0
    %70 = vperm.xlu0 %69, %v54
    %v71 = vpop.permute.xlu0 %70
    %74 = vset.pattern.permute.xlu0 0
    %75 = vperm.xlu0 %74, %v55
    %v76 = vpop.permute.xlu0 %75
    %79 = vset.pattern.permute.xlu0 0
    %80 = vperm.xlu0 %79, %v56
    %v81 = vpop.permute.xlu0 %80
    %84 = vset.pattern.permute.xlu0 0
    %85 = vperm.xlu0 %84, %v57
    %v86 = vpop.permute.xlu0 %85
    %89 = vset.pattern.permute.xlu0 0
    %90 = vperm.xlu0 %89, %v58
    %v91 = vpop.permute.xlu0 %90
    %94 = vset.pattern.permute.xlu0 0
    %95 = vperm.xlu0 %94, %v59
    %v96 = vpop.permute.xlu0 %95
    %99 = vset.pattern.permute.xlu0 0
    %100 = vperm.xlu0 %99, %v60
    %v101 = vpop.permute.xlu0 %100
    %104 = vset.pattern.permute.xlu0 0
    %105 = vperm.xlu0 %104, %v61
    %v106 = vpop.permute.xlu0 %105
    %109 = vset.pattern.permute.xlu0 0
    %110 = vperm.xlu0 %109, %v62
    %v111 = vpop.permute.xlu0 %110
    %v123 = vunpack.c.l.b16 %v43
    %v124 = vunpack.c.l.b16 %v44
    %v125 = vunpack.c.l.b16 %v45
    %v126 = vunpack.c.l.b16 %v46
    %v127 = vunpack.c.l.b16 %v47
    %v128 = vunpack.c.l.b16 %v48
    %v129 = vunpack.c.l.b16 %v49
    %v130 = vunpack.c.l.b16 %v50
    %v131 = vunpack.c.l.b16 %v51
    %v132 = vunpack.c.l.b16 %v52
    %v133 = vpack.c.b16 %v124, %v123
    %v134 = vpack.c.b16 %v126, %v125
    %v135 = vpack.c.b16 %v128, %v127
    %v136 = vpack.c.b16 %v130, %v129
    %v137 = vpack.c.b16 %v132, %v131
    %v142 = vunpack.c.l.b16 %v39
    %v143 = vunpack.c.h.b16 %v39
    %v144 = vunpack.c.l.b16 %v40
    %v145 = vunpack.c.h.b16 %v40
    %v146 = vunpack.c.l.b16 %v41
    %v147 = vunpack.c.h.b16 %v41
    %v148 = vunpack.c.l.b16 %v42
    %v149 = vunpack.c.h.b16 %v42
    %v150 = vpack.c.b16 %v146, %v142
    %v151 = vpack.c.b16 %v147, %v143
    %v152 = vpack.c.b16 %v148, %v144
    %v153 = vpack.c.b16 %v149, %v145
    %vm158 = vcmask 130048
    %v160 = vsel %vm158, %v133, 0
    %v163 = vsel %vm158, %v134, 0
    %v166 = vsel %vm158, %v135, 0
    %v169 = vsel %vm158, %v136, 0
    %v172 = vsel %vm158, %v137, 0
    %174 = vmatpush.bf16.msra.mxu0 0
    %175 = vmatpush.bf16.msra.mxu0 0
    %176 = vmatpush.bf16.msra.mxu0 0
    %177 = vmatpush.bf16.msra.mxu0 0
    %178 = vmatpush.bf16.msra.mxu0 0
    %179 = vmatpush.bf16.msra.mxu0 0
    %180 = vmatpush.bf16.msra.mxu0 0
    %181 = vmatpush.bf16.msra.mxu0 %v150
    %182 = vmatmul.bf16.gmra.mxu0 %v160
    %v183 = vpop.f32.mrf.mxu0
    %v184 = vadd.f32 %v66, %v183
    %v185 = vpop.f32.mrf.mxu0
    %v186 = vadd.f32 %v71, %v185
    %187 = vmatmul.bf16.gmra.mxu0 %v163
    %v188 = vpop.f32.mrf.mxu0
    %v189 = vadd.f32 %v76, %v188
    %v190 = vpop.f32.mrf.mxu0
    %v191 = vadd.f32 %v81, %v190
    %192 = vmatmul.bf16.gmra.mxu0 %v166
    %v193 = vpop.f32.mrf.mxu0
    %v194 = vadd.f32 %v86, %v193
    %v195 = vpop.f32.mrf.mxu0
    %v196 = vadd.f32 %v91, %v195
    %197 = vmatmul.bf16.gmra.mxu0 %v169
    %v198 = vpop.f32.mrf.mxu0
    %v199 = vadd.f32 %v96, %v198
    %v200 = vpop.f32.mrf.mxu0
    %v201 = vadd.f32 %v101, %v200
    %202 = vmatmul.bf16.gmra.mxu0 %v172
    %v203 = vpop.f32.mrf.mxu0
    %v204 = vadd.f32 %v106, %v203
    %v205 = vpop.f32.mrf.mxu0
    %v206 = vadd.f32 %v111, %v205
    %207 = vdwg.mxu0
    %208 = vmatpush.bf16.msra.mxu0 0
    %209 = vmatpush.bf16.msra.mxu0 0
    %210 = vmatpush.bf16.msra.mxu0 0
    %211 = vmatpush.bf16.msra.mxu0 0
    %212 = vmatpush.bf16.msra.mxu0 0
    %213 = vmatpush.bf16.msra.mxu0 0
    %214 = vmatpush.bf16.msra.mxu0 0
    %215 = vmatpush.bf16.msra.mxu0 %v151
    %216 = vmatmul.bf16.gmra.mxu0 %v160
    %v217 = vpop.f32.mrf.mxu0
    %v218 = vadd.f32 %v66, %v217
    %v219 = vpop.f32.mrf.mxu0
    %v220 = vadd.f32 %v71, %v219
    %221 = vmatmul.bf16.gmra.mxu0 %v163
    %v222 = vpop.f32.mrf.mxu0
    %v223 = vadd.f32 %v76, %v222
    %v224 = vpop.f32.mrf.mxu0
    %v225 = vadd.f32 %v81, %v224
    %226 = vmatmul.bf16.gmra.mxu0 %v166
    %v227 = vpop.f32.mrf.mxu0
    %v228 = vadd.f32 %v86, %v227
    %v229 = vpop.f32.mrf.mxu0
    %v230 = vadd.f32 %v91, %v229
    %231 = vmatmul.bf16.gmra.mxu0 %v169
    %v232 = vpop.f32.mrf.mxu0
    %v233 = vadd.f32 %v96, %v232
    %v234 = vpop.f32.mrf.mxu0
    %v235 = vadd.f32 %v101, %v234
    %236 = vmatmul.bf16.gmra.mxu0 %v172
    %v237 = vpop.f32.mrf.mxu0
    %v238 = vadd.f32 %v106, %v237
    %v239 = vpop.f32.mrf.mxu0
    %v240 = vadd.f32 %v111, %v239
    %241 = vdwg.mxu0
    %242 = vmatpush.bf16.msra.mxu0 0
    %243 = vmatpush.bf16.msra.mxu0 0
    %244 = vmatpush.bf16.msra.mxu0 0
    %245 = vmatpush.bf16.msra.mxu0 0
    %246 = vmatpush.bf16.msra.mxu0 0
    %247 = vmatpush.bf16.msra.mxu0 0
    %248 = vmatpush.bf16.msra.mxu0 0
    %249 = vmatpush.bf16.msra.mxu0 %v152
    %250 = vmatmul.bf16.gmra.mxu0 %v160
    %v251 = vpop.f32.mrf.mxu0
    %v252 = vadd.f32 %v66, %v251
    %v253 = vpop.f32.mrf.mxu0
    %v254 = vadd.f32 %v71, %v253
    %255 = vmatmul.bf16.gmra.mxu0 %v163
    %v256 = vpop.f32.mrf.mxu0
    %v257 = vadd.f32 %v76, %v256
    %v258 = vpop.f32.mrf.mxu0
    %v259 = vadd.f32 %v81, %v258
    %260 = vmatmul.bf16.gmra.mxu0 %v166
    %v261 = vpop.f32.mrf.mxu0
    %v262 = vadd.f32 %v86, %v261
    %v263 = vpop.f32.mrf.mxu0
    %v264 = vadd.f32 %v91, %v263
    %265 = vmatmul.bf16.gmra.mxu0 %v169
    %v266 = vpop.f32.mrf.mxu0
    %v267 = vadd.f32 %v96, %v266
    %v268 = vpop.f32.mrf.mxu0
    %v269 = vadd.f32 %v101, %v268
    %270 = vmatmul.bf16.gmra.mxu0 %v172
    %v271 = vpop.f32.mrf.mxu0
    %v272 = vadd.f32 %v106, %v271
    %v273 = vpop.f32.mrf.mxu0
    %v274 = vadd.f32 %v111, %v273
    %275 = vdwg.mxu0
    %276 = vmatpush.bf16.msra.mxu0 0
    %277 = vmatpush.bf16.msra.mxu0 0
    %278 = vmatpush.bf16.msra.mxu0 0
    %279 = vmatpush.bf16.msra.mxu0 0
    %280 = vmatpush.bf16.msra.mxu0 0
    %281 = vmatpush.bf16.msra.mxu0 0
    %282 = vmatpush.bf16.msra.mxu0 0
    %283 = vmatpush.bf16.msra.mxu0 %v153
    %284 = vmatmul.bf16.gmra.mxu0 %v160
    %v285 = vpop.f32.mrf.mxu0
    %v286 = vadd.f32 %v66, %v285
    %v287 = vpop.f32.mrf.mxu0
    %v288 = vadd.f32 %v71, %v287
    %289 = vmatmul.bf16.gmra.mxu0 %v163
    %v290 = vpop.f32.mrf.mxu0
    %v291 = vadd.f32 %v76, %v290
    %v292 = vpop.f32.mrf.mxu0
    %v293 = vadd.f32 %v81, %v292
    %294 = vmatmul.bf16.gmra.mxu0 %v166
    %v295 = vpop.f32.mrf.mxu0
    %v296 = vadd.f32 %v86, %v295
    %v297 = vpop.f32.mrf.mxu0
    %v298 = vadd.f32 %v91, %v297
    %299 = vmatmul.bf16.gmra.mxu0 %v169
    %v300 = vpop.f32.mrf.mxu0
    %v301 = vadd.f32 %v96, %v300
    %v302 = vpop.f32.mrf.mxu0
    %v303 = vadd.f32 %v101, %v302
    %304 = vmatmul.bf16.gmra.mxu0 %v172
    %v305 = vpop.f32.mrf.mxu0
    %v306 = vadd.f32 %v106, %v305
    %v307 = vpop.f32.mrf.mxu0
    %v308 = vadd.f32 %v111, %v307
    %309 = vdwg.mxu0
    %v310 = vmax.f32 %v199, 0.0
    %v311 = vmax.f32 %v233, 0.0
    %v312 = vmax.f32 %v267, 0.0
    %v313 = vmax.f32 %v301, 0.0
    %v314 = vmax.f32 %v201, 0.0
    %v315 = vmax.f32 %v235, 0.0
    %v316 = vmax.f32 %v269, 0.0
    %v317 = vmax.f32 %v303, 0.0
    %v318 = vmax.f32 %v204, 0.0
    %v319 = vmax.f32 %v238, 0.0
    %v320 = vmax.f32 %v272, 0.0
    %v321 = vmax.f32 %v306, 0.0
    %v322 = vmax.f32 %v206, 0.0
    %v323 = vmax.f32 %v240, 0.0
    %v324 = vmax.f32 %v274, 0.0
    %v325 = vmax.f32 %v308, 0.0
    %v326 = vld [vmem:[%s7] sm:$0xff]
    %v327 = vld [vmem:[%s7 + $0x8] sm:$0xff]
    %v328 = vld [vmem:[%s7 + $0x10] sm:$0x11]
    %v329 = vld [vmem:[%s7 + $0x18] sm:$0x11]
    %330 = vrot.lane.b32.xlu0 %v153, 17
    %v331 = vpop.permute.xlu0 %330
    %332 = vrot.lane.b32.xlu0 %v150, 17
    %v333 = vpop.permute.xlu0 %332
    %334 = vrot.lane.b32.xlu0 %v151, 17
    %v335 = vpop.permute.xlu0 %334
    %336 = vrot.lane.b32.xlu0 %v152, 17
    %v337 = vpop.permute.xlu0 %336
    %vm338 = vcmask 138240
    %v339 = vsel %vm338, %v333, %v335
    %v340 = vsel %vm338, %v335, %v337
    %v341 = vsel %vm338, %v337, %v331
    %vm345 = vcmask 138240
    %v348 = vsel %vm345, %v331, %v333
    %v352 = vunpack.c.l.b16 %v326
    %v353 = vunpack.c.h.b16 %v326
    %v354 = vunpack.c.l.b16 %v327
    %v355 = vunpack.c.h.b16 %v327
    %v356 = vpack.c.b16 %v352, %v352
    %v357 = vpack.c.b16 %v353, %v353
    %v358 = vpack.c.b16 %v354, %v354
    %v359 = vpack.c.b16 %v355, %v355
    %v361 = vpack.i.b16 %v356, %v356
    %v363 = vperm.slane %v361, 0
    %v365 = vpack.i.b16 %v357, %v357
    %v367 = vperm.slane %v365, 0
    %v369 = vpack.i.b16 %v358, %v358
    %v371 = vperm.slane %v369, 0
    %v373 = vpack.i.b16 %v359, %v359
    %v375 = vperm.slane %v373, 0
    %v376 = vunpack.c.l.bf16 %v348
    %v377 = vunpack.c.l.bf16 %v339
    %v378 = vunpack.c.l.bf16 %v340
    %v379 = vunpack.c.l.bf16 %v341
    %v380 = vunpack.c.h.bf16 %v348
    %v381 = vunpack.c.h.bf16 %v339
    %v382 = vunpack.c.h.bf16 %v340
    %v383 = vunpack.c.h.bf16 %v341
    %v384 = vunpack.c.l.bf16 %v363
    %v385 = vunpack.c.l.bf16 %v367
    %v386 = vunpack.c.l.bf16 %v371
    %v387 = vunpack.c.l.bf16 %v375
    %v388 = vmul.f32 %v376, %v384
    %v389 = vmul.f32 %v377, %v385
    %v390 = vmul.f32 %v378, %v386
    %v391 = vmul.f32 %v379, %v387
    %v392 = vmul.f32 %v380, %v384
    %v393 = vmul.f32 %v381, %v385
    %v394 = vmul.f32 %v382, %v386
    %v395 = vmul.f32 %v383, %v387
    %v396 = vpack.c.bf16 %v389, %v388
    %v397 = vpack.c.bf16 %v391, %v390
    %v398 = vpack.c.bf16 %v393, %v392
    %v399 = vpack.c.bf16 %v395, %v394
    %400 = vrot.lane.b32.xlu0 %v153, 16
    %v401 = vpop.permute.xlu0 %400
    %402 = vrot.lane.b32.xlu0 %v150, 16
    %v403 = vpop.permute.xlu0 %402
    %404 = vrot.lane.b32.xlu0 %v151, 16
    %v405 = vpop.permute.xlu0 %404
    %406 = vrot.lane.b32.xlu0 %v152, 16
    %v407 = vpop.permute.xlu0 %406
    %vm408 = vcmask 130048
    %v409 = vsel %vm408, %v403, %v405
    %v410 = vsel %vm408, %v405, %v407
    %v411 = vsel %vm408, %v407, %v401
    %v417 = vsel %vm158, %v401, %v403
    %v419 = vshrl.u32 %v356, 16
    %v420 = vpack.i.b16 %v419, %v419
    %v422 = vperm.slane %v420, 0
    %v423 = vshrl.u32 %v357, 16
    %v424 = vpack.i.b16 %v423, %v423
    %v426 = vperm.slane %v424, 0
    %v427 = vshrl.u32 %v358, 16
    %v428 = vpack.i.b16 %v427, %v427
    %v430 = vperm.slane %v428, 0
    %v431 = vshrl.u32 %v359, 16
    %v432 = vpack.i.b16 %v431, %v431
    %v434 = vperm.slane %v432, 0
    %v435 = vunpack.c.l.bf16 %v417
    %v436 = vunpack.c.l.bf16 %v409
    %v437 = vunpack.c.l.bf16 %v410
    %v438 = vunpack.c.l.bf16 %v411
    %v439 = vunpack.c.h.bf16 %v417
    %v440 = vunpack.c.h.bf16 %v409
    %v441 = vunpack.c.h.bf16 %v410
    %v442 = vunpack.c.h.bf16 %v411
    %v443 = vunpack.c.l.bf16 %v422
    %v444 = vunpack.c.l.bf16 %v426
    %v445 = vunpack.c.l.bf16 %v430
    %v446 = vunpack.c.l.bf16 %v434
    %v447 = vmul.f32 %v435, %v443
    %v448 = vmul.f32 %v436, %v444
    %v449 = vmul.f32 %v437, %v445
    %v450 = vmul.f32 %v438, %v446
    %v451 = vmul.f32 %v439, %v443
    %v452 = vmul.f32 %v440, %v444
    %v453 = vmul.f32 %v441, %v445
    %v454 = vmul.f32 %v442, %v446
    %v455 = vpack.c.bf16 %v448, %v447
    %v456 = vpack.c.bf16 %v450, %v449
    %v457 = vpack.c.bf16 %v452, %v451
    %v458 = vpack.c.bf16 %v454, %v453
    %459 = vrot.lane.b32.xlu0 %v153, 15
    %v460 = vpop.permute.xlu0 %459
    %461 = vrot.lane.b32.xlu0 %v150, 15
    %v462 = vpop.permute.xlu0 %461
    %463 = vrot.lane.b32.xlu0 %v151, 15
    %v464 = vpop.permute.xlu0 %463
    %465 = vrot.lane.b32.xlu0 %v152, 15
    %v466 = vpop.permute.xlu0 %465
    %vm467 = vcmask 121856
    %v468 = vsel %vm467, %v462, %v464
    %v469 = vsel %vm467, %v464, %v466
    %v470 = vsel %vm467, %v466, %v460
    %vm474 = vcmask 121856
    %v477 = vsel %vm474, %v460, %v462
    %v479 = vperm.slane %v361, 1
    %v480 = vperm.slane %v365, 1
    %v481 = vperm.slane %v369, 1
    %v482 = vperm.slane %v373, 1
    %v483 = vunpack.c.l.bf16 %v477
    %v484 = vunpack.c.l.bf16 %v468
    %v485 = vunpack.c.l.bf16 %v469
    %v486 = vunpack.c.l.bf16 %v470
    %v487 = vunpack.c.h.bf16 %v477
    %v488 = vunpack.c.h.bf16 %v468
    %v489 = vunpack.c.h.bf16 %v469
    %v490 = vunpack.c.h.bf16 %v470
    %v491 = vunpack.c.l.bf16 %v479
    %v492 = vunpack.c.l.bf16 %v480
    %v493 = vunpack.c.l.bf16 %v481
    %v494 = vunpack.c.l.bf16 %v482
    %v495 = vmul.f32 %v483, %v491
    %v496 = vmul.f32 %v484, %v492
    %v497 = vmul.f32 %v485, %v493
    %v498 = vmul.f32 %v486, %v494
    %v499 = vmul.f32 %v487, %v491
    %v500 = vmul.f32 %v488, %v492
    %v501 = vmul.f32 %v489, %v493
    %v502 = vmul.f32 %v490, %v494
    %v503 = vpack.c.bf16 %v496, %v495
    %v504 = vpack.c.bf16 %v498, %v497
    %v505 = vpack.c.bf16 %v500, %v499
    %v506 = vpack.c.bf16 %v502, %v501
    %507 = vrot.lane.b32.xlu0 %v153, 1
    %v508 = vpop.permute.xlu0 %507
    %509 = vrot.lane.b32.xlu0 %v150, 1
    %v510 = vpop.permute.xlu0 %509
    %511 = vrot.lane.b32.xlu0 %v151, 1
    %v512 = vpop.permute.xlu0 %511
    %513 = vrot.lane.b32.xlu0 %v152, 1
    %v514 = vpop.permute.xlu0 %513
    %vm515 = vcmask 7168
    %v516 = vsel %vm515, %v510, %v512
    %v517 = vsel %vm515, %v512, %v514
    %v518 = vsel %vm515, %v514, %v508
    %vm522 = vcmask 7168
    %v525 = vsel %vm522, %v508, %v510
    %v527 = vperm.slane %v420, 1
    %v528 = vperm.slane %v424, 1
    %v529 = vperm.slane %v428, 1
    %v530 = vperm.slane %v432, 1
    %v531 = vunpack.c.l.bf16 %v525
    %v532 = vunpack.c.l.bf16 %v516
    %v533 = vunpack.c.l.bf16 %v517
    %v534 = vunpack.c.l.bf16 %v518
    %v535 = vunpack.c.h.bf16 %v525
    %v536 = vunpack.c.h.bf16 %v516
    %v537 = vunpack.c.h.bf16 %v517
    %v538 = vunpack.c.h.bf16 %v518
    %v539 = vunpack.c.l.bf16 %v527
    %v540 = vunpack.c.l.bf16 %v528
    %v541 = vunpack.c.l.bf16 %v529
    %v542 = vunpack.c.l.bf16 %v530
    %v543 = vmul.f32 %v531, %v539
    %v544 = vmul.f32 %v532, %v540
    %v545 = vmul.f32 %v533, %v541
    %v546 = vmul.f32 %v534, %v542
    %v547 = vmul.f32 %v535, %v539
    %v548 = vmul.f32 %v536, %v540
    %v549 = vmul.f32 %v537, %v541
    %v550 = vmul.f32 %v538, %v542
    %v551 = vpack.c.bf16 %v544, %v543
    %v552 = vpack.c.bf16 %v546, %v545
    %v553 = vpack.c.bf16 %v548, %v547
    %v554 = vpack.c.bf16 %v550, %v549
    %v555 = vperm.slane %v361, 2
    %v556 = vperm.slane %v365, 2
    %v557 = vperm.slane %v369, 2
    %v558 = vperm.slane %v373, 2
    %v559 = vunpack.c.l.bf16 %v39
    %v560 = vunpack.c.h.bf16 %v39
    %v561 = vunpack.c.l.bf16 %v40
    %v562 = vunpack.c.h.bf16 %v40
    %v563 = vunpack.c.l.bf16 %v41
    %v564 = vunpack.c.h.bf16 %v41
    %v565 = vunpack.c.l.bf16 %v42
    %v566 = vunpack.c.h.bf16 %v42
    %v567 = vunpack.c.l.bf16 %v555
    %v568 = vunpack.c.l.bf16 %v556
    %v569 = vunpack.c.l.bf16 %v557
    %v570 = vunpack.c.l.bf16 %v558
    %v571 = vmul.f32 %v559, %v567
    %v572 = vmul.f32 %v560, %v568
    %v573 = vmul.f32 %v561, %v569
    %v574 = vmul.f32 %v562, %v570
    %v575 = vmul.f32 %v563, %v567
    %v576 = vmul.f32 %v564, %v568
    %v577 = vmul.f32 %v565, %v569
    %v578 = vmul.f32 %v566, %v570
    %v579 = vpack.c.bf16 %v572, %v571
    %v580 = vpack.c.bf16 %v574, %v573
    %v581 = vpack.c.bf16 %v576, %v575
    %v582 = vpack.c.bf16 %v578, %v577
    %583 = vrot.lane.b32.xlu0 %v150, 127
    %v584 = vpop.permute.xlu0 %583
    %585 = vrot.lane.b32.xlu0 %v151, 127
    %v586 = vpop.permute.xlu0 %585
    %587 = vrot.lane.b32.xlu0 %v152, 127
    %v588 = vpop.permute.xlu0 %587
    %589 = vrot.lane.b32.xlu0 %v153, 127
    %v590 = vpop.permute.xlu0 %589
    %vm591 = vcmask 1039360
    %v592 = vsel %vm591, %v584, %v586
    %v593 = vsel %vm591, %v586, %v588
    %v594 = vsel %vm591, %v588, %v590
    %vm598 = vcmask 1039360
    %v601 = vsel %vm598, %v590, %v584
    %v603 = vperm.slane %v420, 2
    %v604 = vperm.slane %v424, 2
    %v605 = vperm.slane %v428, 2
    %v606 = vperm.slane %v432, 2
    %v607 = vunpack.c.l.bf16 %v592
    %v608 = vunpack.c.l.bf16 %v593
    %v609 = vunpack.c.l.bf16 %v594
    %v610 = vunpack.c.l.bf16 %v601
    %v611 = vunpack.c.h.bf16 %v592
    %v612 = vunpack.c.h.bf16 %v593
    %v613 = vunpack.c.h.bf16 %v594
    %v614 = vunpack.c.h.bf16 %v601
    %v615 = vunpack.c.l.bf16 %v603
    %v616 = vunpack.c.l.bf16 %v604
    %v617 = vunpack.c.l.bf16 %v605
    %v618 = vunpack.c.l.bf16 %v606
    %v619 = vmul.f32 %v607, %v615
    %v620 = vmul.f32 %v608, %v616
    %v621 = vmul.f32 %v609, %v617
    %v622 = vmul.f32 %v610, %v618
    %v623 = vmul.f32 %v611, %v615
    %v624 = vmul.f32 %v612, %v616
    %v625 = vmul.f32 %v613, %v617
    %v626 = vmul.f32 %v614, %v618
    %v627 = vpack.c.bf16 %v620, %v619
    %v628 = vpack.c.bf16 %v622, %v621
    %v629 = vpack.c.bf16 %v624, %v623
    %v630 = vpack.c.bf16 %v626, %v625
    %631 = vrot.lane.b32.xlu0 %v150, 113
    %v632 = vpop.permute.xlu0 %631
    %633 = vrot.lane.b32.xlu0 %v151, 113
    %v634 = vpop.permute.xlu0 %633
    %635 = vrot.lane.b32.xlu0 %v152, 113
    %v636 = vpop.permute.xlu0 %635
    %637 = vrot.lane.b32.xlu0 %v153, 113
    %v638 = vpop.permute.xlu0 %637
    %vm639 = vcmask 924672
    %v640 = vsel %vm639, %v632, %v634
    %v641 = vsel %vm639, %v634, %v636
    %v642 = vsel %vm639, %v636, %v638
    %vm646 = vcmask 924672
    %v649 = vsel %vm646, %v638, %v632
    %v651 = vperm.slane %v361, 3
    %v652 = vperm.slane %v365, 3
    %v653 = vperm.slane %v369, 3
    %v654 = vperm.slane %v373, 3
    %v655 = vunpack.c.l.bf16 %v640
    %v656 = vunpack.c.l.bf16 %v641
    %v657 = vunpack.c.l.bf16 %v642
    %v658 = vunpack.c.l.bf16 %v649
    %v659 = vunpack.c.h.bf16 %v640
    %v660 = vunpack.c.h.bf16 %v641
    %v661 = vunpack.c.h.bf16 %v642
    %v662 = vunpack.c.h.bf16 %v649
    %v663 = vunpack.c.l.bf16 %v651
    %v664 = vunpack.c.l.bf16 %v652
    %v665 = vunpack.c.l.bf16 %v653
    %v666 = vunpack.c.l.bf16 %v654
    %v667 = vmul.f32 %v655, %v663
    %v668 = vmul.f32 %v656, %v664
    %v669 = vmul.f32 %v657, %v665
    %v670 = vmul.f32 %v658, %v666
    %v671 = vmul.f32 %v659, %v663
    %v672 = vmul.f32 %v660, %v664
    %v673 = vmul.f32 %v661, %v665
    %v674 = vmul.f32 %v662, %v666
    %v675 = vpack.c.bf16 %v668, %v667
    %v676 = vpack.c.bf16 %v670, %v669
    %v677 = vpack.c.bf16 %v672, %v671
    %v678 = vpack.c.bf16 %v674, %v673
    %679 = vrot.lane.b32.xlu0 %v150, 112
    %v680 = vpop.permute.xlu0 %679
    %681 = vrot.lane.b32.xlu0 %v151, 112
    %v682 = vpop.permute.xlu0 %681
    %683 = vrot.lane.b32.xlu0 %v152, 112
    %v684 = vpop.permute.xlu0 %683
    %685 = vrot.lane.b32.xlu0 %v153, 112
    %v686 = vpop.permute.xlu0 %685
    %vm687 = vcmask 916480
    %v688 = vsel %vm687, %v680, %v682
    %v689 = vsel %vm687, %v682, %v684
    %v690 = vsel %vm687, %v684, %v686
    %vm694 = vcmask 916480
    %v697 = vsel %vm694, %v686, %v680
    %v699 = vperm.slane %v420, 3
    %v700 = vperm.slane %v424, 3
    %v701 = vperm.slane %v428, 3
    %v702 = vperm.slane %v432, 3
    %v703 = vunpack.c.l.bf16 %v688
    %v704 = vunpack.c.l.bf16 %v689
    %v705 = vunpack.c.l.bf16 %v690
    %v706 = vunpack.c.l.bf16 %v697
    %v707 = vunpack.c.h.bf16 %v688
    %v708 = vunpack.c.h.bf16 %v689
    %v709 = vunpack.c.h.bf16 %v690
    %v710 = vunpack.c.h.bf16 %v697
    %v711 = vunpack.c.l.bf16 %v699
    %v712 = vunpack.c.l.bf16 %v700
    %v713 = vunpack.c.l.bf16 %v701
    %v714 = vunpack.c.l.bf16 %v702
    %v715 = vmul.f32 %v703, %v711
    %v716 = vmul.f32 %v704, %v712
    %v717 = vmul.f32 %v705, %v713
    %v718 = vmul.f32 %v706, %v714
    %v719 = vmul.f32 %v707, %v711
    %v720 = vmul.f32 %v708, %v712
    %v721 = vmul.f32 %v709, %v713
    %v722 = vmul.f32 %v710, %v714
    %v723 = vpack.c.bf16 %v716, %v715
    %v724 = vpack.c.bf16 %v718, %v717
    %v725 = vpack.c.bf16 %v720, %v719
    %v726 = vpack.c.bf16 %v722, %v721
    %727 = vrot.lane.b32.xlu0 %v150, 111
    %v728 = vpop.permute.xlu0 %727
    %729 = vrot.lane.b32.xlu0 %v151, 111
    %v730 = vpop.permute.xlu0 %729
    %731 = vrot.lane.b32.xlu0 %v152, 111
    %v732 = vpop.permute.xlu0 %731
    %733 = vrot.lane.b32.xlu0 %v153, 111
    %v734 = vpop.permute.xlu0 %733
    %vm735 = vcmask 908288
    %v736 = vsel %vm735, %v728, %v730
    %v737 = vsel %vm735, %v730, %v732
    %v738 = vsel %vm735, %v732, %v734
    %vm742 = vcmask 908288
    %v745 = vsel %vm742, %v734, %v728
    %v749 = vunpack.c.l.b16 %v328
    %v750 = vunpack.c.h.b16 %v328
    %v751 = vunpack.c.l.b16 %v329
    %v752 = vunpack.c.h.b16 %v329
    %v753 = vpack.c.b16 %v749, %v749
    %v754 = vpack.c.b16 %v750, %v750
    %v755 = vpack.c.b16 %v751, %v751
    %v756 = vpack.c.b16 %v752, %v752
    %v758 = vpack.i.b16 %v753, %v753
    %v760 = vperm.slane %v758, 0
    %v762 = vpack.i.b16 %v754, %v754
    %v764 = vperm.slane %v762, 0
    %v766 = vpack.i.b16 %v755, %v755
    %v768 = vperm.slane %v766, 0
    %v770 = vpack.i.b16 %v756, %v756
    %v772 = vperm.slane %v770, 0
    %v773 = vunpack.c.l.bf16 %v736
    %v774 = vunpack.c.l.bf16 %v737
    %v775 = vunpack.c.l.bf16 %v738
    %v776 = vunpack.c.l.bf16 %v745
    %v777 = vunpack.c.h.bf16 %v736
    %v778 = vunpack.c.h.bf16 %v737
    %v779 = vunpack.c.h.bf16 %v738
    %v780 = vunpack.c.h.bf16 %v745
    %v781 = vunpack.c.l.bf16 %v760
    %v782 = vunpack.c.l.bf16 %v764
    %v783 = vunpack.c.l.bf16 %v768
    %v784 = vunpack.c.l.bf16 %v772
    %v785 = vmul.f32 %v773, %v781
    %v786 = vmul.f32 %v774, %v782
    %v787 = vmul.f32 %v775, %v783
    %v788 = vmul.f32 %v776, %v784
    %v789 = vmul.f32 %v777, %v781
    %v790 = vmul.f32 %v778, %v782
    %v791 = vmul.f32 %v779, %v783
    %v792 = vmul.f32 %v780, %v784
    %v793 = vpack.c.bf16 %v786, %v785
    %v794 = vpack.c.bf16 %v788, %v787
    %v795 = vpack.c.bf16 %v790, %v789
    %v796 = vpack.c.bf16 %v792, %v791
    %v801 = vunpack.c.l.b16 %v396
    %v802 = vunpack.c.h.b16 %v396
    %v803 = vunpack.c.l.b16 %v397
    %v804 = vunpack.c.h.b16 %v397
    %v805 = vunpack.c.l.b16 %v398
    %v806 = vunpack.c.h.b16 %v398
    %v807 = vunpack.c.l.b16 %v399
    %v808 = vunpack.c.h.b16 %v399
    %v809 = vpack.c.b16 %v805, %v801
    %v810 = vpack.c.b16 %v806, %v802
    %v811 = vpack.c.b16 %v807, %v803
    %v812 = vpack.c.b16 %v808, %v804
    %v821 = vunpack.c.l.b16 %v455
    %v822 = vunpack.c.h.b16 %v455
    %v823 = vunpack.c.l.b16 %v456
    %v824 = vunpack.c.h.b16 %v456
    %v825 = vunpack.c.l.b16 %v457
    %v826 = vunpack.c.h.b16 %v457
    %v827 = vunpack.c.l.b16 %v458
    %v828 = vunpack.c.h.b16 %v458
    %v829 = vpack.c.b16 %v825, %v821
    %v830 = vpack.c.b16 %v826, %v822
    %v831 = vpack.c.b16 %v827, %v823
    %v832 = vpack.c.b16 %v828, %v824
    %v841 = vunpack.c.l.b16 %v503
    %v842 = vunpack.c.h.b16 %v503
    %v843 = vunpack.c.l.b16 %v504
    %v844 = vunpack.c.h.b16 %v504
    %v845 = vunpack.c.l.b16 %v505
    %v846 = vunpack.c.h.b16 %v505
    %v847 = vunpack.c.l.b16 %v506
    %v848 = vunpack.c.h.b16 %v506
    %v849 = vpack.c.b16 %v845, %v841
    %v850 = vpack.c.b16 %v846, %v842
    %v851 = vpack.c.b16 %v847, %v843
    %v852 = vpack.c.b16 %v848, %v844
    %v861 = vunpack.c.l.b16 %v551
    %v862 = vunpack.c.h.b16 %v551
    %v863 = vunpack.c.l.b16 %v552
    %v864 = vunpack.c.h.b16 %v552
    %v865 = vunpack.c.l.b16 %v553
    %v866 = vunpack.c.h.b16 %v553
    %v867 = vunpack.c.l.b16 %v554
    %v868 = vunpack.c.h.b16 %v554
    %v869 = vpack.c.b16 %v865, %v861
    %v870 = vpack.c.b16 %v866, %v862
    %v871 = vpack.c.b16 %v867, %v863
    %v872 = vpack.c.b16 %v868, %v864
    %v881 = vunpack.c.l.b16 %v579
    %v882 = vunpack.c.h.b16 %v579
    %v883 = vunpack.c.l.b16 %v580
    %v884 = vunpack.c.h.b16 %v580
    %v885 = vunpack.c.l.b16 %v581
    %v886 = vunpack.c.h.b16 %v581
    %v887 = vunpack.c.l.b16 %v582
    %v888 = vunpack.c.h.b16 %v582
    %v889 = vpack.c.b16 %v885, %v881
    %v890 = vpack.c.b16 %v886, %v882
    %v891 = vpack.c.b16 %v887, %v883
    %v892 = vpack.c.b16 %v888, %v884
    %v901 = vunpack.c.l.b16 %v627
    %v902 = vunpack.c.h.b16 %v627
    %v903 = vunpack.c.l.b16 %v628
    %v904 = vunpack.c.h.b16 %v628
    %v905 = vunpack.c.l.b16 %v629
    %v906 = vunpack.c.h.b16 %v629
    %v907 = vunpack.c.l.b16 %v630
    %v908 = vunpack.c.h.b16 %v630
    %v909 = vpack.c.b16 %v905, %v901
    %v910 = vpack.c.b16 %v906, %v902
    %v911 = vpack.c.b16 %v907, %v903
    %v912 = vpack.c.b16 %v908, %v904
    %v921 = vunpack.c.l.b16 %v675
    %v922 = vunpack.c.h.b16 %v675
    %v923 = vunpack.c.l.b16 %v676
    %v924 = vunpack.c.h.b16 %v676
    %v925 = vunpack.c.l.b16 %v677
    %v926 = vunpack.c.h.b16 %v677
    %v927 = vunpack.c.l.b16 %v678
    %v928 = vunpack.c.h.b16 %v678
    %v929 = vpack.c.b16 %v925, %v921
    %v930 = vpack.c.b16 %v926, %v922
    %v931 = vpack.c.b16 %v927, %v923
    %v932 = vpack.c.b16 %v928, %v924
    %v941 = vunpack.c.l.b16 %v723
    %v942 = vunpack.c.h.b16 %v723
    %v943 = vunpack.c.l.b16 %v724
    %v944 = vunpack.c.h.b16 %v724
    %v945 = vunpack.c.l.b16 %v725
    %v946 = vunpack.c.h.b16 %v725
    %v947 = vunpack.c.l.b16 %v726
    %v948 = vunpack.c.h.b16 %v726
    %v949 = vpack.c.b16 %v945, %v941
    %v950 = vpack.c.b16 %v946, %v942
    %v951 = vpack.c.b16 %v947, %v943
    %v952 = vpack.c.b16 %v948, %v944
    %v961 = vunpack.c.l.b16 %v793
    %v962 = vunpack.c.h.b16 %v793
    %v963 = vunpack.c.l.b16 %v794
    %v964 = vunpack.c.h.b16 %v794
    %v965 = vunpack.c.l.b16 %v795
    %v966 = vunpack.c.h.b16 %v795
    %v967 = vunpack.c.l.b16 %v796
    %v968 = vunpack.c.h.b16 %v796
    %v969 = vpack.c.b16 %v965, %v961
    %v970 = vpack.c.b16 %v966, %v962
    %v971 = vpack.c.b16 %v967, %v963
    %v972 = vpack.c.b16 %v968, %v964
    %v977 = vld [vmem:[%s3] sm:$0xff]
    %v978 = vld [vmem:[%s3 + $0x8] sm:$0xff]
    %v979 = vld [vmem:[%s3 + $0x10] sm:$0xff]
    %v980 = vld [vmem:[%s3 + $0x18] sm:$0xff]
    %v981 = vld [vmem:[%s4] sm:$0xff]
    %v982 = vld [vmem:[%s4 + $0x8] sm:$0xff]
    %v983 = vld [vmem:[%s4 + $0x10] sm:$0xff]
    %v984 = vld [vmem:[%s4 + $0x18] sm:$0xff]
    %986 = vset.pattern.permute.xlu0 0
    %987 = vperm.xlu0 %986, %v981
    %v988 = vpop.permute.xlu0 %987
    %991 = vset.pattern.permute.xlu0 0
    %992 = vperm.xlu0 %991, %v982
    %v993 = vpop.permute.xlu0 %992
    %996 = vset.pattern.permute.xlu0 0
    %997 = vperm.xlu0 %996, %v983
    %v998 = vpop.permute.xlu0 %997
    %1001 = vset.pattern.permute.xlu0 0
    %1002 = vperm.xlu0 %1001, %v984
    %v1003 = vpop.permute.xlu0 %1002
    %v1009 = vunpack.c.l.b16 %v977
    %v1010 = vunpack.c.h.b16 %v977
    %v1011 = vunpack.c.l.b16 %v978
    %v1012 = vunpack.c.h.b16 %v978
    %v1013 = vunpack.c.l.b16 %v979
    %v1014 = vunpack.c.h.b16 %v979
    %v1015 = vunpack.c.l.b16 %v980
    %v1016 = vunpack.c.h.b16 %v980
    %v1017 = vpack.c.b16 %v1011, %v1009
    %v1018 = vpack.c.b16 %v1012, %v1010
    %v1019 = vpack.c.b16 %v1015, %v1013
    %v1020 = vpack.c.b16 %v1016, %v1014
    %v1024 = vsel %vm158, %v1018, 0
    %v1027 = vsel %vm158, %v1020, 0
    %1029 = vmatpush.bf16.msra.mxu0 %v949
    %1030 = vmatpush.bf16.msra.mxu0 %v929
    %1031 = vmatpush.bf16.msra.mxu0 %v909
    %1032 = vmatpush.bf16.msra.mxu0 %v889
    %1033 = vmatpush.bf16.msra.mxu0 %v869
    %1034 = vmatpush.bf16.msra.mxu0 %v849
    %1035 = vmatpush.bf16.msra.mxu0 %v829
    %1036 = vmatpush.bf16.msra.mxu0 %v809
    %1037 = vmatmul.bf16.gmra.mxu0 %v1017
    %v1038 = vpop.f32.mrf.mxu0
    %v1039 = vadd.f32 %v988, %v1038
    %v1040 = vpop.f32.mrf.mxu0
    %v1041 = vadd.f32 %v993, %v1040
    %1042 = vmatmul.bf16.gmra.mxu0 %v1019
    %v1043 = vpop.f32.mrf.mxu0
    %v1044 = vadd.f32 %v998, %v1043
    %v1045 = vpop.f32.mrf.mxu0
    %v1046 = vadd.f32 %v1003, %v1045
    %1047 = vdwg.mxu0
    %1048 = vmatpush.bf16.msra.mxu0 0
    %1049 = vmatpush.bf16.msra.mxu0 0
    %1050 = vmatpush.bf16.msra.mxu0 0
    %1051 = vmatpush.bf16.msra.mxu0 0
    %1052 = vmatpush.bf16.msra.mxu0 0
    %1053 = vmatpush.bf16.msra.mxu0 0
    %1054 = vmatpush.bf16.msra.mxu0 0
    %1055 = vmatpush.bf16.msra.mxu0 %v969
    %1056 = vmatmul.bf16.gmra.mxu0 %v1024
    %v1057 = vpop.f32.mrf.mxu0
    %v1058 = vadd.f32 %v1039, %v1057
    %v1059 = vpop.f32.mrf.mxu0
    %v1060 = vadd.f32 %v1041, %v1059
    %1061 = vmatmul.bf16.gmra.mxu0 %v1027
    %v1062 = vpop.f32.mrf.mxu0
    %v1063 = vadd.f32 %v1044, %v1062
    %v1064 = vpop.f32.mrf.mxu0
    %v1065 = vadd.f32 %v1046, %v1064
    %1066 = vdwg.mxu0
    %1067 = vmatpush.bf16.msra.mxu0 %v950
    %1068 = vmatpush.bf16.msra.mxu0 %v930
    %1069 = vmatpush.bf16.msra.mxu0 %v910
    %1070 = vmatpush.bf16.msra.mxu0 %v890
    %1071 = vmatpush.bf16.msra.mxu0 %v870
    %1072 = vmatpush.bf16.msra.mxu0 %v850
    %1073 = vmatpush.bf16.msra.mxu0 %v830
    %1074 = vmatpush.bf16.msra.mxu0 %v810
    %1075 = vmatmul.bf16.gmra.mxu0 %v1017
    %v1076 = vpop.f32.mrf.mxu0
    %v1077 = vadd.f32 %v988, %v1076
    %v1078 = vpop.f32.mrf.mxu0
    %v1079 = vadd.f32 %v993, %v1078
    %1080 = vmatmul.bf16.gmra.mxu0 %v1019
    %v1081 = vpop.f32.mrf.mxu0
    %v1082 = vadd.f32 %v998, %v1081
    %v1083 = vpop.f32.mrf.mxu0
    %v1084 = vadd.f32 %v1003, %v1083
    %1085 = vdwg.mxu0
    %1086 = vmatpush.bf16.msra.mxu0 0
    %1087 = vmatpush.bf16.msra.mxu0 0
    %1088 = vmatpush.bf16.msra.mxu0 0
    %1089 = vmatpush.bf16.msra.mxu0 0
    %1090 = vmatpush.bf16.msra.mxu0 0
    %1091 = vmatpush.bf16.msra.mxu0 0
    %1092 = vmatpush.bf16.msra.mxu0 0
    %1093 = vmatpush.bf16.msra.mxu0 %v970
    %1094 = vmatmul.bf16.gmra.mxu0 %v1024
    %v1095 = vpop.f32.mrf.mxu0
    %v1096 = vadd.f32 %v1077, %v1095
    %v1097 = vpop.f32.mrf.mxu0
    %v1098 = vadd.f32 %v1079, %v1097
    %1099 = vmatmul.bf16.gmra.mxu0 %v1027
    %v1100 = vpop.f32.mrf.mxu0
    %v1101 = vadd.f32 %v1082, %v1100
    %v1102 = vpop.f32.mrf.mxu0
    %v1103 = vadd.f32 %v1084, %v1102
    %1104 = vdwg.mxu0
    %1105 = vmatpush.bf16.msra.mxu0 %v951
    %1106 = vmatpush.bf16.msra.mxu0 %v931
    %1107 = vmatpush.bf16.msra.mxu0 %v911
    %1108 = vmatpush.bf16.msra.mxu0 %v891
    %1109 = vmatpush.bf16.msra.mxu0 %v871
    %1110 = vmatpush.bf16.msra.mxu0 %v851
    %1111 = vmatpush.bf16.msra.mxu0 %v831
    %1112 = vmatpush.bf16.msra.mxu0 %v811
    %1113 = vmatmul.bf16.gmra.mxu0 %v1017
    %v1114 = vpop.f32.mrf.mxu0
    %v1115 = vadd.f32 %v988, %v1114
    %v1116 = vpop.f32.mrf.mxu0
    %v1117 = vadd.f32 %v993, %v1116
    %1118 = vmatmul.bf16.gmra.mxu0 %v1019
    %v1119 = vpop.f32.mrf.mxu0
    %v1120 = vadd.f32 %v998, %v1119
    %v1121 = vpop.f32.mrf.mxu0
    %v1122 = vadd.f32 %v1003, %v1121
    %1123 = vdwg.mxu0
    %1124 = vmatpush.bf16.msra.mxu0 0
    %1125 = vmatpush.bf16.msra.mxu0 0
    %1126 = vmatpush.bf16.msra.mxu0 0
    %1127 = vmatpush.bf16.msra.mxu0 0
    %1128 = vmatpush.bf16.msra.mxu0 0
    %1129 = vmatpush.bf16.msra.mxu0 0
    %1130 = vmatpush.bf16.msra.mxu0 0
    %1131 = vmatpush.bf16.msra.mxu0 %v971
    %1132 = vmatmul.bf16.gmra.mxu0 %v1024
    %v1133 = vpop.f32.mrf.mxu0
    %v1134 = vadd.f32 %v1115, %v1133
    %v1135 = vpop.f32.mrf.mxu0
    %v1136 = vadd.f32 %v1117, %v1135
    %1137 = vmatmul.bf16.gmra.mxu0 %v1027
    %v1138 = vpop.f32.mrf.mxu0
    %v1139 = vadd.f32 %v1120, %v1138
    %v1140 = vpop.f32.mrf.mxu0
    %v1141 = vadd.f32 %v1122, %v1140
    %1142 = vdwg.mxu0
    %1143 = vmatpush.bf16.msra.mxu0 %v952
    %1144 = vmatpush.bf16.msra.mxu0 %v932
    %1145 = vmatpush.bf16.msra.mxu0 %v912
    %1146 = vmatpush.bf16.msra.mxu0 %v892
    %1147 = vmatpush.bf16.msra.mxu0 %v872
    %1148 = vmatpush.bf16.msra.mxu0 %v852
    %1149 = vmatpush.bf16.msra.mxu0 %v832
    %1150 = vmatpush.bf16.msra.mxu0 %v812
    %1151 = vmatmul.bf16.gmra.mxu0 %v1017
    %v1152 = vpop.f32.mrf.mxu0
    %v1153 = vadd.f32 %v988, %v1152
    %v1154 = vpop.f32.mrf.mxu0
    %v1155 = vadd.f32 %v993, %v1154
    %1156 = vmatmul.bf16.gmra.mxu0 %v1019
    %v1157 = vpop.f32.mrf.mxu0
    %v1158 = vadd.f32 %v998, %v1157
    %v1159 = vpop.f32.mrf.mxu0
    %v1160 = vadd.f32 %v1003, %v1159
    %1161 = vdwg.mxu0
    %1162 = vmatpush.bf16.msra.mxu0 0
    %1163 = vmatpush.bf16.msra.mxu0 0
    %1164 = vmatpush.bf16.msra.mxu0 0
    %1165 = vmatpush.bf16.msra.mxu0 0
    %1166 = vmatpush.bf16.msra.mxu0 0
    %1167 = vmatpush.bf16.msra.mxu0 0
    %1168 = vmatpush.bf16.msra.mxu0 0
    %1169 = vmatpush.bf16.msra.mxu0 %v972
    %1170 = vmatmul.bf16.gmra.mxu0 %v1024
    %v1171 = vpop.f32.mrf.mxu0
    %v1172 = vadd.f32 %v1153, %v1171
    %v1173 = vpop.f32.mrf.mxu0
    %v1174 = vadd.f32 %v1155, %v1173
    %1175 = vmatmul.bf16.gmra.mxu0 %v1027
    %v1176 = vpop.f32.mrf.mxu0
    %v1177 = vadd.f32 %v1158, %v1176
    %v1178 = vpop.f32.mrf.mxu0
    %v1179 = vadd.f32 %v1160, %v1178
    %1180 = vdwg.mxu0
    %v1181 = vmax.f32 %v1058, 0.0
    %v1182 = vmax.f32 %v1096, 0.0
    %v1183 = vmax.f32 %v1134, 0.0
    %v1184 = vmax.f32 %v1172, 0.0
    %v1185 = vmax.f32 %v1060, 0.0
    %v1186 = vmax.f32 %v1098, 0.0
    %v1187 = vmax.f32 %v1136, 0.0
    %v1188 = vmax.f32 %v1174, 0.0
    %v1189 = vmax.f32 %v1063, 0.0
    %v1190 = vmax.f32 %v1101, 0.0
    %v1191 = vmax.f32 %v1139, 0.0
    %v1192 = vmax.f32 %v1177, 0.0
    %v1193 = vmax.f32 %v1065, 0.0
    %v1194 = vmax.f32 %v1103, 0.0
    %v1195 = vmax.f32 %v1141, 0.0
    %v1196 = vmax.f32 %v1179, 0.0
    %v1197 = vmul.f32 %v184, %v184
    %v1198 = vmul.f32 %v218, %v218
    %v1199 = vrot.slane %v1197, 4
    %v1200 = vadd.f32 %v1197, %v1199
    %v1201 = vrot.slane %v1200, 2
    %v1202 = vadd.f32 %v1200, %v1201
    %v1203 = vrot.slane %v1202, 1
    %v1204 = vadd.f32 %v1202, %v1203
    %v1205 = vrot.slane %v1198, 4
    %v1206 = vadd.f32 %v1198, %v1205
    %v1207 = vrot.slane %v1206, 2
    %v1208 = vadd.f32 %v1206, %v1207
    %v1209 = vrot.slane %v1208, 1
    %v1210 = vadd.f32 %v1208, %v1209
    %v1211 = vrsqrt.pop %v1204
    %v1212 = vmul.f32 %v1211, %v1204
    %v1213 = vmul.f32 %v1212, %v1211
    %v1214 = vmul.f32 0.5, %v1213
    %v1215 = vsub.f32 1.5, %v1214
    %v1216 = vmul.f32 %v1211, %v1215
    %vm1217 = vweird.f32 %v1204
    %vm1218 = vweird.f32 %v1211
    %vm1219 = vmor %vm1217, %vm1218
    %v1220 = vsel %vm1219, %v1211, %v1216
    %v1221 = vrsqrt.pop %v1210
    %v1222 = vmul.f32 %v1221, %v1210
    %v1223 = vmul.f32 %v1222, %v1221
    %v1224 = vmul.f32 0.5, %v1223
    %v1225 = vsub.f32 1.5, %v1224
    %v1226 = vmul.f32 %v1221, %v1225
    %vm1227 = vweird.f32 %v1210
    %vm1228 = vweird.f32 %v1221
    %vm1229 = vmor %vm1227, %vm1228
    %v1230 = vsel %vm1229, %v1221, %v1226
    %v1231 = vmul.f32 %v184, %v1220
    %v1232 = vmul.f32 %v218, %v1230
    %v1233 = vmul.f32 %v186, %v186
    %v1234 = vmul.f32 %v220, %v220
    %v1235 = vrot.slane %v1233, 4
    %v1236 = vadd.f32 %v1233, %v1235
    %v1237 = vrot.slane %v1236, 2
    %v1238 = vadd.f32 %v1236, %v1237
    %v1239 = vrot.slane %v1238, 1
    %v1240 = vadd.f32 %v1238, %v1239
    %v1241 = vrot.slane %v1234, 4
    %v1242 = vadd.f32 %v1234, %v1241
    %v1243 = vrot.slane %v1242, 2
    %v1244 = vadd.f32 %v1242, %v1243
    %v1245 = vrot.slane %v1244, 1
    %v1246 = vadd.f32 %v1244, %v1245
    %v1247 = vrsqrt.pop %v1240
    %v1248 = vmul.f32 %v1247, %v1240
    %v1249 = vmul.f32 %v1248, %v1247
    %v1250 = vmul.f32 0.5, %v1249
    %v1251 = vsub.f32 1.5, %v1250
    %v1252 = vmul.f32 %v1247, %v1251
    %vm1253 = vweird.f32 %v1240
    %vm1254 = vweird.f32 %v1247
    %vm1255 = vmor %vm1253, %vm1254
    %v1256 = vsel %vm1255, %v1247, %v1252
    %v1257 = vrsqrt.pop %v1246
    %v1258 = vmul.f32 %v1257, %v1246
    %v1259 = vmul.f32 %v1258, %v1257
    %v1260 = vmul.f32 0.5, %v1259
    %v1261 = vsub.f32 1.5, %v1260
    %v1262 = vmul.f32 %v1257, %v1261
    %vm1263 = vweird.f32 %v1246
    %vm1264 = vweird.f32 %v1257
    %vm1265 = vmor %vm1263, %vm1264
    %v1266 = vsel %vm1265, %v1257, %v1262
    %v1267 = vmul.f32 %v186, %v1256
    %v1268 = vmul.f32 %v220, %v1266
    %v1269 = vadd.f32 %v1267, %v1268
    %1270 = vadd.xlane.f32.xlu0 %v1269
    %v1271 = vpop.xlane.xlu0 %1270
    %v1272 = vadd.f32 %v1271, 1e-06
    %v1273 = vmul.f32 %v1231, %v1272
    %v1274 = vmul.f32 %v1232, %v1272
    %v1275 = vrot.slane %v1273, 4
    %v1276 = vadd.f32 %v1273, %v1275
    %v1277 = vrot.slane %v1276, 2
    %v1278 = vadd.f32 %v1276, %v1277
    %v1279 = vrot.slane %v1278, 1
    %v1280 = vadd.f32 %v1278, %v1279
    %v1281 = vrot.slane %v1274, 4
    %v1282 = vadd.f32 %v1274, %v1281
    %v1283 = vrot.slane %v1282, 2
    %v1284 = vadd.f32 %v1282, %v1283
    %v1285 = vrot.slane %v1284, 1
    %v1286 = vadd.f32 %v1284, %v1285
    %v1287 = vadd.f32 %v1280, 256.0
    %v1288 = vadd.f32 %v1286, 256.0
    %v1289 = vrcp.pop %v1287
    %v1290 = vrcp.pop %v1288
    %v1291 = vadd.f32 %v189, %v223
    %1292 = vadd.xlane.f32.xlu0 %v1291
    %v1293 = vpop.xlane.xlu0 %1292
    %v1294 = vadd.f32 %v191, %v225
    %1295 = vadd.xlane.f32.xlu0 %v1294
    %v1296 = vpop.xlane.xlu0 %1295
    %v1297 = vadd.f32 %v194, %v228
    %1298 = vadd.xlane.f32.xlu0 %v1297
    %v1299 = vpop.xlane.xlu0 %1298
    %v1300 = vadd.f32 %v196, %v230
    %1301 = vadd.xlane.f32.xlu0 %v1300
    %v1302 = vpop.xlane.xlu0 %1301
    %v1303 = vpack.c.bf16 %v1267, %v1267
    %v1304 = vpack.c.bf16 %v1268, %v1268
    %v1305 = vpack.c.bf16 %v191, %v189
    %v1306 = vpack.c.bf16 %v225, %v223
    %v1307 = vpack.c.bf16 %v196, %v194
    %v1308 = vpack.c.bf16 %v230, %v228
    %1309 = vmatpush.bf16.xpose.msra.mxu0 0
    %1310 = vmatpush.bf16.xpose.msra.mxu0 0
    %1311 = vmatpush.bf16.xpose.msra.mxu0 0
    %1312 = vmatpush.bf16.xpose.msra.mxu0 0
    %1313 = vmatpush.bf16.xpose.msra.mxu0 0
    %1314 = vmatpush.bf16.xpose.msra.mxu0 0
    %1315 = vmatpush.bf16.xpose.msra.mxu0 %v1307
    %1316 = vmatpush.bf16.xpose.msra.mxu0 %v1305
    %1317 = vmatmul.bf16.gmra.mxu0 %v1303
    %v1318 = vpop.f32.mrf.mxu0
    %v1319 = vadd.f32 0.0, %v1318
    %v1320 = vpop.f32.mrf.mxu0
    %1321 = vdwg.mxu0
    %1322 = vmatpush.bf16.xpose.msra.mxu0 0
    %1323 = vmatpush.bf16.xpose.msra.mxu0 0
    %1324 = vmatpush.bf16.xpose.msra.mxu0 0
    %1325 = vmatpush.bf16.xpose.msra.mxu0 0
    %1326 = vmatpush.bf16.xpose.msra.mxu0 0
    %1327 = vmatpush.bf16.xpose.msra.mxu0 0
    %1328 = vmatpush.bf16.xpose.msra.mxu0 %v1308
    %1329 = vmatpush.bf16.xpose.msra.mxu0 %v1306
    %1330 = vmatmul.bf16.gmra.mxu0 %v1304
    %v1331 = vpop.f32.mrf.mxu0
    %v1332 = vadd.f32 %v1319, %v1331
    %v1333 = vpop.f32.mrf.mxu0
    %1334 = vdwg.mxu0
    %v1335 = vpack.c.bf16 %v1332, %v1332
    %v1336 = vpack.c.bf16 %v1231, %v1231
    %v1337 = vpack.c.bf16 %v1232, %v1232
    %1338 = vxpose.xlu0.c.b16.start [1/8] %v1335, 128
    %1339 = vxpose.xlu0.c.b16.cont [2/8] 0, 128
    %1340 = vxpose.xlu0.c.b16.cont [3/8] 0, 128
    %1341 = vxpose.xlu0.c.b16.cont [4/8] 0, 128
    %1342 = vxpose.xlu0.c.b16.cont [5/8] 0, 128
    %1343 = vxpose.xlu0.c.b16.cont [6/8] 0, 128
    %1344 = vxpose.xlu0.c.b16.cont [7/8] 0, 128
    %1345 = vxpose.xlu0.c.b16.end [8/8] 0, 128
    %v1346 = vpop.trf.xlu0
    %v1347 = vpop.trf.xlu0
    %v1348 = vpop.trf.xlu0
    %v1349 = vpop.trf.xlu0
    %v1350 = vpop.trf.xlu0
    %v1351 = vpop.trf.xlu0
    %v1352 = vpop.trf.xlu0
    %v1353 = vpop.trf.xlu0
    %vm1354 = vcmask 64512
    %v1356 = vsel %vm1354, %v1346, 0
    %v1359 = vsel %vm1354, %v1347, 0
    %vm1361 = vcmask 1043456
    %v1363 = vsel %vm1361, %v1336, 0
    %v1366 = vsel %vm1361, %v1337, 0
    %1368 = vmatpush.bf16.msra.mxu0 0
    %1369 = vmatpush.bf16.msra.mxu0 0
    %1370 = vmatpush.bf16.msra.mxu0 0
    %1371 = vmatpush.bf16.msra.mxu0 0
    %1372 = vmatpush.bf16.msra.mxu0 0
    %1373 = vmatpush.bf16.msra.mxu0 0
    %1374 = vmatpush.bf16.msra.mxu0 0
    %1375 = vmatpush.bf16.msra.mxu0 %v1363
    %1376 = vmatmul.bf16.gmra.mxu0 %v1356
    %v1377 = vpop.f32.mrf.mxu0
    %v1378 = vadd.f32 0.0, %v1377
    %v1379 = vpop.f32.mrf.mxu0
    %v1380 = vadd.f32 0.0, %v1379
    %1381 = vmatmul.bf16.gmra.mxu0 %v1359
    %v1382 = vpop.f32.mrf.mxu0
    %v1383 = vadd.f32 0.0, %v1382
    %v1384 = vpop.f32.mrf.mxu0
    %v1385 = vadd.f32 0.0, %v1384
    %1386 = vdwg.mxu0
    %1387 = vmatpush.bf16.msra.mxu0 0
    %1388 = vmatpush.bf16.msra.mxu0 0
    %1389 = vmatpush.bf16.msra.mxu0 0
    %1390 = vmatpush.bf16.msra.mxu0 0
    %1391 = vmatpush.bf16.msra.mxu0 0
    %1392 = vmatpush.bf16.msra.mxu0 0
    %1393 = vmatpush.bf16.msra.mxu0 0
    %1394 = vmatpush.bf16.msra.mxu0 %v1366
    %1395 = vmatmul.bf16.gmra.mxu0 %v1356
    %v1396 = vpop.f32.mrf.mxu0
    %v1397 = vadd.f32 0.0, %v1396
    %v1398 = vpop.f32.mrf.mxu0
    %v1399 = vadd.f32 0.0, %v1398
    %1400 = vmatmul.bf16.gmra.mxu0 %v1359
    %v1401 = vpop.f32.mrf.mxu0
    %v1402 = vadd.f32 0.0, %v1401
    %v1403 = vpop.f32.mrf.mxu0
    %v1404 = vadd.f32 0.0, %v1403
    %1405 = vdwg.mxu0
    %v1406 = vadd.f32 %v1293, %v1378
    %v1407 = vadd.f32 %v1293, %v1397
    %v1408 = vadd.f32 %v1296, %v1380
    %v1409 = vadd.f32 %v1296, %v1399
    %v1410 = vadd.f32 %v1299, %v1383
    %v1411 = vadd.f32 %v1299, %v1402
    %v1412 = vadd.f32 %v1302, %v1385
    %v1413 = vadd.f32 %v1302, %v1404
    %v1414 = vmul.f32 %v1406, %v1289
    %v1415 = vmul.f32 %v1407, %v1290
    %v1416 = vmul.f32 %v1408, %v1289
    %v1417 = vmul.f32 %v1409, %v1290
    %v1418 = vmul.f32 %v1410, %v1289
    %v1419 = vmul.f32 %v1411, %v1290
    %v1420 = vmul.f32 %v1412, %v1289
    %v1421 = vmul.f32 %v1413, %v1290
    %v1422 = vmul.f32 %v252, %v252
    %v1423 = vmul.f32 %v286, %v286
    %v1424 = vrot.slane %v1422, 4
    %v1425 = vadd.f32 %v1422, %v1424
    %v1426 = vrot.slane %v1425, 2
    %v1427 = vadd.f32 %v1425, %v1426
    %v1428 = vrot.slane %v1427, 1
    %v1429 = vadd.f32 %v1427, %v1428
    %v1430 = vrot.slane %v1423, 4
    %v1431 = vadd.f32 %v1423, %v1430
    %v1432 = vrot.slane %v1431, 2
    %v1433 = vadd.f32 %v1431, %v1432
    %v1434 = vrot.slane %v1433, 1
    %v1435 = vadd.f32 %v1433, %v1434
    %v1436 = vrsqrt.pop %v1429
    %v1437 = vmul.f32 %v1436, %v1429
    %v1438 = vmul.f32 %v1437, %v1436
    %v1439 = vmul.f32 0.5, %v1438
    %v1440 = vsub.f32 1.5, %v1439
    %v1441 = vmul.f32 %v1436, %v1440
    %vm1442 = vweird.f32 %v1429
    %vm1443 = vweird.f32 %v1436
    %vm1444 = vmor %vm1442, %vm1443
    %v1445 = vsel %vm1444, %v1436, %v1441
    %v1446 = vrsqrt.pop %v1435
    %v1447 = vmul.f32 %v1446, %v1435
    %v1448 = vmul.f32 %v1447, %v1446
    %v1449 = vmul.f32 0.5, %v1448
    %v1450 = vsub.f32 1.5, %v1449
    %v1451 = vmul.f32 %v1446, %v1450
    %vm1452 = vweird.f32 %v1435
    %vm1453 = vweird.f32 %v1446
    %vm1454 = vmor %vm1452, %vm1453
    %v1455 = vsel %vm1454, %v1446, %v1451
    %v1456 = vmul.f32 %v252, %v1445
    %v1457 = vmul.f32 %v286, %v1455
    %v1458 = vmul.f32 %v254, %v254
    %v1459 = vmul.f32 %v288, %v288
    %v1460 = vrot.slane %v1458, 4
    %v1461 = vadd.f32 %v1458, %v1460
    %v1462 = vrot.slane %v1461, 2
    %v1463 = vadd.f32 %v1461, %v1462
    %v1464 = vrot.slane %v1463, 1
    %v1465 = vadd.f32 %v1463, %v1464
    %v1466 = vrot.slane %v1459, 4
    %v1467 = vadd.f32 %v1459, %v1466
    %v1468 = vrot.slane %v1467, 2
    %v1469 = vadd.f32 %v1467, %v1468
    %v1470 = vrot.slane %v1469, 1
    %v1471 = vadd.f32 %v1469, %v1470
    %v1472 = vrsqrt.pop %v1465
    %v1473 = vmul.f32 %v1472, %v1465
    %v1474 = vmul.f32 %v1473, %v1472
    %v1475 = vmul.f32 0.5, %v1474
    %v1476 = vsub.f32 1.5, %v1475
    %v1477 = vmul.f32 %v1472, %v1476
    %vm1478 = vweird.f32 %v1465
    %vm1479 = vweird.f32 %v1472
    %vm1480 = vmor %vm1478, %vm1479
    %v1481 = vsel %vm1480, %v1472, %v1477
    %v1482 = vrsqrt.pop %v1471
    %v1483 = vmul.f32 %v1482, %v1471
    %v1484 = vmul.f32 %v1483, %v1482
    %v1485 = vmul.f32 0.5, %v1484
    %v1486 = vsub.f32 1.5, %v1485
    %v1487 = vmul.f32 %v1482, %v1486
    %vm1488 = vweird.f32 %v1471
    %vm1489 = vweird.f32 %v1482
    %vm1490 = vmor %vm1488, %vm1489
    %v1491 = vsel %vm1490, %v1482, %v1487
    %v1492 = vmul.f32 %v254, %v1481
    %v1493 = vmul.f32 %v288, %v1491
    %v1494 = vadd.f32 %v1492, %v1493
    %1495 = vadd.xlane.f32.xlu0 %v1494
    %v1496 = vpop.xlane.xlu0 %1495
    %v1497 = vadd.f32 %v1496, 1e-06
    %v1498 = vmul.f32 %v1456, %v1497
    %v1499 = vmul.f32 %v1457, %v1497
    %v1500 = vrot.slane %v1498, 4
    %v1501 = vadd.f32 %v1498, %v1500
    %v1502 = vrot.slane %v1501, 2
    %v1503 = vadd.f32 %v1501, %v1502
    %v1504 = vrot.slane %v1503, 1
    %v1505 = vadd.f32 %v1503, %v1504
    %v1506 = vrot.slane %v1499, 4
    %v1507 = vadd.f32 %v1499, %v1506
    %v1508 = vrot.slane %v1507, 2
    %v1509 = vadd.f32 %v1507, %v1508
    %v1510 = vrot.slane %v1509, 1
    %v1511 = vadd.f32 %v1509, %v1510
    %v1512 = vadd.f32 %v1505, 256.0
    %v1513 = vadd.f32 %v1511, 256.0
    %v1514 = vrcp.pop %v1512
    %v1515 = vrcp.pop %v1513
    %v1516 = vadd.f32 %v257, %v291
    %1517 = vadd.xlane.f32.xlu0 %v1516
    %v1518 = vpop.xlane.xlu0 %1517
    %v1519 = vadd.f32 %v259, %v293
    %1520 = vadd.xlane.f32.xlu0 %v1519
    %v1521 = vpop.xlane.xlu0 %1520
    %v1522 = vadd.f32 %v262, %v296
    %1523 = vadd.xlane.f32.xlu0 %v1522
    %v1524 = vpop.xlane.xlu0 %1523
    %v1525 = vadd.f32 %v264, %v298
    %1526 = vadd.xlane.f32.xlu0 %v1525
    %v1527 = vpop.xlane.xlu0 %1526
    %v1528 = vpack.c.bf16 %v1492, %v1492
    %v1529 = vpack.c.bf16 %v1493, %v1493
    %v1530 = vpack.c.bf16 %v259, %v257
    %v1531 = vpack.c.bf16 %v293, %v291
    %v1532 = vpack.c.bf16 %v264, %v262
    %v1533 = vpack.c.bf16 %v298, %v296
    %1534 = vmatpush.bf16.xpose.msra.mxu0 0
    %1535 = vmatpush.bf16.xpose.msra.mxu0 0
    %1536 = vmatpush.bf16.xpose.msra.mxu0 0
    %1537 = vmatpush.bf16.xpose.msra.mxu0 0
    %1538 = vmatpush.bf16.xpose.msra.mxu0 0
    %1539 = vmatpush.bf16.xpose.msra.mxu0 0
    %1540 = vmatpush.bf16.xpose.msra.mxu0 %v1532
    %1541 = vmatpush.bf16.xpose.msra.mxu0 %v1530
    %1542 = vmatmul.bf16.gmra.mxu0 %v1528
    %v1543 = vpop.f32.mrf.mxu0
    %v1544 = vadd.f32 0.0, %v1543
    %v1545 = vpop.f32.mrf.mxu0
    %1546 = vdwg.mxu0
    %1547 = vmatpush.bf16.xpose.msra.mxu0 0
    %1548 = vmatpush.bf16.xpose.msra.mxu0 0
    %1549 = vmatpush.bf16.xpose.msra.mxu0 0
    %1550 = vmatpush.bf16.xpose.msra.mxu0 0
    %1551 = vmatpush.bf16.xpose.msra.mxu0 0
    %1552 = vmatpush.bf16.xpose.msra.mxu0 0
    %1553 = vmatpush.bf16.xpose.msra.mxu0 %v1533
    %1554 = vmatpush.bf16.xpose.msra.mxu0 %v1531
    %1555 = vmatmul.bf16.gmra.mxu0 %v1529
    %v1556 = vpop.f32.mrf.mxu0
    %v1557 = vadd.f32 %v1544, %v1556
    %v1558 = vpop.f32.mrf.mxu0
    %1559 = vdwg.mxu0
    %v1560 = vpack.c.bf16 %v1557, %v1557
    %v1561 = vpack.c.bf16 %v1456, %v1456
    %v1562 = vpack.c.bf16 %v1457, %v1457
    %1563 = vxpose.xlu0.c.b16.start [1/8] %v1560, 128
    %1564 = vxpose.xlu0.c.b16.cont [2/8] 0, 128
    %1565 = vxpose.xlu0.c.b16.cont [3/8] 0, 128
    %1566 = vxpose.xlu0.c.b16.cont [4/8] 0, 128
    %1567 = vxpose.xlu0.c.b16.cont [5/8] 0, 128
    %1568 = vxpose.xlu0.c.b16.cont [6/8] 0, 128
    %1569 = vxpose.xlu0.c.b16.cont [7/8] 0, 128
    %1570 = vxpose.xlu0.c.b16.end [8/8] 0, 128
    %v1571 = vpop.trf.xlu0
    %v1572 = vpop.trf.xlu0
    %v1573 = vpop.trf.xlu0
    %v1574 = vpop.trf.xlu0
    %v1575 = vpop.trf.xlu0
    %v1576 = vpop.trf.xlu0
    %v1577 = vpop.trf.xlu0
    %v1578 = vpop.trf.xlu0
    %v1580 = vsel %vm1354, %v1571, 0
    %v1583 = vsel %vm1354, %v1572, 0
    %v1586 = vsel %vm1361, %v1561, 0
    %v1589 = vsel %vm1361, %v1562, 0
    %1591 = vmatpush.bf16.msra.mxu0 0
    %1592 = vmatpush.bf16.msra.mxu0 0
    %1593 = vmatpush.bf16.msra.mxu0 0
    %1594 = vmatpush.bf16.msra.mxu0 0
    %1595 = vmatpush.bf16.msra.mxu0 0
    %1596 = vmatpush.bf16.msra.mxu0 0
    %1597 = vmatpush.bf16.msra.mxu0 0
    %1598 = vmatpush.bf16.msra.mxu0 %v1586
    %1599 = vmatmul.bf16.gmra.mxu0 %v1580
    %v1600 = vpop.f32.mrf.mxu0
    %v1601 = vadd.f32 0.0, %v1600
    %v1602 = vpop.f32.mrf.mxu0
    %v1603 = vadd.f32 0.0, %v1602
    %1604 = vmatmul.bf16.gmra.mxu0 %v1583
    %v1605 = vpop.f32.mrf.mxu0
    %v1606 = vadd.f32 0.0, %v1605
    %v1607 = vpop.f32.mrf.mxu0
    %v1608 = vadd.f32 0.0, %v1607
    %1609 = vdwg.mxu0
    %1610 = vmatpush.bf16.msra.mxu0 0
    %1611 = vmatpush.bf16.msra.mxu0 0
    %1612 = vmatpush.bf16.msra.mxu0 0
    %1613 = vmatpush.bf16.msra.mxu0 0
    %1614 = vmatpush.bf16.msra.mxu0 0
    %1615 = vmatpush.bf16.msra.mxu0 0
    %1616 = vmatpush.bf16.msra.mxu0 0
    %1617 = vmatpush.bf16.msra.mxu0 %v1589
    %1618 = vmatmul.bf16.gmra.mxu0 %v1580
    %v1619 = vpop.f32.mrf.mxu0
    %v1620 = vadd.f32 0.0, %v1619
    %v1621 = vpop.f32.mrf.mxu0
    %v1622 = vadd.f32 0.0, %v1621
    %1623 = vmatmul.bf16.gmra.mxu0 %v1583
    %v1624 = vpop.f32.mrf.mxu0
    %v1625 = vadd.f32 0.0, %v1624
    %v1626 = vpop.f32.mrf.mxu0
    %v1627 = vadd.f32 0.0, %v1626
    %1628 = vdwg.mxu0
    %v1629 = vadd.f32 %v1518, %v1601
    %v1630 = vadd.f32 %v1518, %v1620
    %v1631 = vadd.f32 %v1521, %v1603
    %v1632 = vadd.f32 %v1521, %v1622
    %v1633 = vadd.f32 %v1524, %v1606
    %v1634 = vadd.f32 %v1524, %v1625
    %v1635 = vadd.f32 %v1527, %v1608
    %v1636 = vadd.f32 %v1527, %v1627
    %v1637 = vmul.f32 %v1629, %v1514
    %v1638 = vmul.f32 %v1630, %v1515
    %v1639 = vmul.f32 %v1631, %v1514
    %v1640 = vmul.f32 %v1632, %v1515
    %v1641 = vmul.f32 %v1633, %v1514
    %v1642 = vmul.f32 %v1634, %v1515
    %v1643 = vmul.f32 %v1635, %v1514
    %v1644 = vmul.f32 %v1636, %v1515
    %v1645 = vadd.f32 %v1414, %v1181
    %v1646 = vadd.f32 %v1415, %v1182
    %v1647 = vadd.f32 %v1637, %v1183
    %v1648 = vadd.f32 %v1638, %v1184
    %v1649 = vadd.f32 %v1416, %v1185
    %v1650 = vadd.f32 %v1417, %v1186
    %v1651 = vadd.f32 %v1639, %v1187
    %v1652 = vadd.f32 %v1640, %v1188
    %v1653 = vadd.f32 %v1418, %v1189
    %v1654 = vadd.f32 %v1419, %v1190
    %v1655 = vadd.f32 %v1641, %v1191
    %v1656 = vadd.f32 %v1642, %v1192
    %v1657 = vadd.f32 %v1420, %v1193
    %v1658 = vadd.f32 %v1421, %v1194
    %v1659 = vadd.f32 %v1643, %v1195
    %v1660 = vadd.f32 %v1644, %v1196
    %v1661 = vadd.f32 %v1645, %v310
    %v1662 = vadd.f32 %v1646, %v311
    %v1663 = vadd.f32 %v1647, %v312
    %v1664 = vadd.f32 %v1648, %v313
    %v1665 = vadd.f32 %v1649, %v314
    %v1666 = vadd.f32 %v1650, %v315
    %v1667 = vadd.f32 %v1651, %v316
    %v1668 = vadd.f32 %v1652, %v317
    %v1669 = vadd.f32 %v1653, %v318
    %v1670 = vadd.f32 %v1654, %v319
    %v1671 = vadd.f32 %v1655, %v320
    %v1672 = vadd.f32 %v1656, %v321
    %v1673 = vadd.f32 %v1657, %v322
    %v1674 = vadd.f32 %v1658, %v323
    %v1675 = vadd.f32 %v1659, %v324
    %v1676 = vadd.f32 %v1660, %v325
    %v1677 = vpack.c.bf16 %v1665, %v1661
    %v1678 = vpack.c.bf16 %v1666, %v1662
    %v1679 = vpack.c.bf16 %v1667, %v1663
    %v1680 = vpack.c.bf16 %v1668, %v1664
    %v1681 = vpack.c.bf16 %v1673, %v1669
    %v1682 = vpack.c.bf16 %v1674, %v1670
    %v1683 = vpack.c.bf16 %v1675, %v1671
    %v1684 = vpack.c.bf16 %v1676, %v1672
    %v1685 = vld [vmem:[%s5] sm:$0xf]
    %v1686 = vld [vmem:[%s5 + $0x4] sm:$0xf]
    %v1687 = vld [vmem:[%s5 + $0x8] sm:$0xf]
    %v1688 = vld [vmem:[%s5 + $0xc] sm:$0xf]
    %v1689 = vld [vmem:[%s6] sm:$0xff]
    %v1690 = vld [vmem:[%s6 + $0x8] sm:$0xff]
    %v1691 = vld [vmem:[%s6 + $0x10] sm:$0xff]
    %v1692 = vld [vmem:[%s6 + $0x18] sm:$0xff]
    %1694 = vset.pattern.permute.xlu0 0
    %1695 = vperm.xlu0 %1694, %v1689
    %v1696 = vpop.permute.xlu0 %1695
    %1699 = vset.pattern.permute.xlu0 0
    %1700 = vperm.xlu0 %1699, %v1690
    %v1701 = vpop.permute.xlu0 %1700
    %1704 = vset.pattern.permute.xlu0 0
    %1705 = vperm.xlu0 %1704, %v1691
    %v1706 = vpop.permute.xlu0 %1705
    %1709 = vset.pattern.permute.xlu0 0
    %1710 = vperm.xlu0 %1709, %v1692
    %v1711 = vpop.permute.xlu0 %1710
    %v1717 = vunpack.c.l.b16 %v1685
    %v1718 = vunpack.c.l.b16 %v1686
    %v1719 = vunpack.c.l.b16 %v1687
    %v1720 = vunpack.c.l.b16 %v1688
    %v1721 = vpack.c.b16 %v1718, %v1717
    %v1722 = vpack.c.b16 %v1720, %v1719
    %vm1723 = vcmask 261120
    %v1725 = vsel %vm1723, %v1721, 0
    %v1728 = vsel %vm1723, %v1722, 0
    %1730 = vmatpush.bf16.msra.mxu0 0
    %1731 = vmatpush.bf16.msra.mxu0 0
    %1732 = vmatpush.bf16.msra.mxu0 0
    %1733 = vmatpush.bf16.msra.mxu0 0
    %1734 = vmatpush.bf16.msra.mxu0 0
    %1735 = vmatpush.bf16.msra.mxu0 0
    %1736 = vmatpush.bf16.msra.mxu0 %v1681
    %1737 = vmatpush.bf16.msra.mxu0 %v1677
    %1738 = vmatmul.bf16.gmra.mxu0 %v1725
    %v1739 = vpop.f32.mrf.mxu0
    %v1740 = vadd.f32 %v1696, %v1739
    %v1741 = vpop.f32.mrf.mxu0
    %v1742 = vadd.f32 %v1701, %v1741
    %1743 = vmatmul.bf16.gmra.mxu0 %v1728
    %v1744 = vpop.f32.mrf.mxu0
    %v1745 = vadd.f32 %v1706, %v1744
    %v1746 = vpop.f32.mrf.mxu0
    %v1747 = vadd.f32 %v1711, %v1746
    %1748 = vdwg.mxu0
    %1749 = vmatpush.bf16.msra.mxu0 0
    %1750 = vmatpush.bf16.msra.mxu0 0
    %1751 = vmatpush.bf16.msra.mxu0 0
    %1752 = vmatpush.bf16.msra.mxu0 0
    %1753 = vmatpush.bf16.msra.mxu0 0
    %1754 = vmatpush.bf16.msra.mxu0 0
    %1755 = vmatpush.bf16.msra.mxu0 %v1682
    %1756 = vmatpush.bf16.msra.mxu0 %v1678
    %1757 = vmatmul.bf16.gmra.mxu0 %v1725
    %v1758 = vpop.f32.mrf.mxu0
    %v1759 = vadd.f32 %v1696, %v1758
    %v1760 = vpop.f32.mrf.mxu0
    %v1761 = vadd.f32 %v1701, %v1760
    %1762 = vmatmul.bf16.gmra.mxu0 %v1728
    %v1763 = vpop.f32.mrf.mxu0
    %v1764 = vadd.f32 %v1706, %v1763
    %v1765 = vpop.f32.mrf.mxu0
    %v1766 = vadd.f32 %v1711, %v1765
    %1767 = vdwg.mxu0
    %1768 = vmatpush.bf16.msra.mxu0 0
    %1769 = vmatpush.bf16.msra.mxu0 0
    %1770 = vmatpush.bf16.msra.mxu0 0
    %1771 = vmatpush.bf16.msra.mxu0 0
    %1772 = vmatpush.bf16.msra.mxu0 0
    %1773 = vmatpush.bf16.msra.mxu0 0
    %1774 = vmatpush.bf16.msra.mxu0 %v1683
    %1775 = vmatpush.bf16.msra.mxu0 %v1679
    %1776 = vmatmul.bf16.gmra.mxu0 %v1725
    %v1777 = vpop.f32.mrf.mxu0
    %v1778 = vadd.f32 %v1696, %v1777
    %v1779 = vpop.f32.mrf.mxu0
    %v1780 = vadd.f32 %v1701, %v1779
    %1781 = vmatmul.bf16.gmra.mxu0 %v1728
    %v1782 = vpop.f32.mrf.mxu0
    %v1783 = vadd.f32 %v1706, %v1782
    %v1784 = vpop.f32.mrf.mxu0
    %v1785 = vadd.f32 %v1711, %v1784
    %1786 = vdwg.mxu0
    %1787 = vmatpush.bf16.msra.mxu0 0
    %1788 = vmatpush.bf16.msra.mxu0 0
    %1789 = vmatpush.bf16.msra.mxu0 0
    %1790 = vmatpush.bf16.msra.mxu0 0
    %1791 = vmatpush.bf16.msra.mxu0 0
    %1792 = vmatpush.bf16.msra.mxu0 0
    %1793 = vmatpush.bf16.msra.mxu0 %v1684
    %1794 = vmatpush.bf16.msra.mxu0 %v1680
    %1795 = vmatmul.bf16.gmra.mxu0 %v1725
    %v1796 = vpop.f32.mrf.mxu0
    %v1797 = vadd.f32 %v1696, %v1796
    %v1798 = vpop.f32.mrf.mxu0
    %v1799 = vadd.f32 %v1701, %v1798
    %1800 = vmatmul.bf16.gmra.mxu0 %v1728
    %v1801 = vpop.f32.mrf.mxu0
    %v1802 = vadd.f32 %v1706, %v1801
    %v1803 = vpop.f32.mrf.mxu0
    %v1804 = vadd.f32 %v1711, %v1803
    %1805 = vdwg.mxu0
    %v1806 = vmax.f32 %v1740, 0.0
    %v1807 = vmax.f32 %v1759, 0.0
    %v1808 = vmax.f32 %v1778, 0.0
    %v1809 = vmax.f32 %v1797, 0.0
    %v1810 = vmax.f32 %v1742, 0.0
    %v1811 = vmax.f32 %v1761, 0.0
    %v1812 = vmax.f32 %v1780, 0.0
    %v1813 = vmax.f32 %v1799, 0.0
    %v1814 = vmax.f32 %v1745, 0.0
    %v1815 = vmax.f32 %v1764, 0.0
    %v1816 = vmax.f32 %v1783, 0.0
    %v1817 = vmax.f32 %v1802, 0.0
    %v1818 = vmax.f32 %v1747, 0.0
    %v1819 = vmax.f32 %v1766, 0.0
    %v1820 = vmax.f32 %v1785, 0.0
    %v1821 = vmax.f32 %v1804, 0.0
    %1822 = vst [vmem:[#allocation2] sm:$0xff] %v1806
    %1823 = vst [vmem:[#allocation2 + $0x8] sm:$0xff] %v1807
    %1824 = vst [vmem:[#allocation2 + $0x10] sm:$0xff] %v1808
    %1825 = vst [vmem:[#allocation2 + $0x18] sm:$0xff] %v1809
    %1826 = vst [vmem:[#allocation2 + $0x20] sm:$0xff] %v1810
    %1827 = vst [vmem:[#allocation2 + $0x28] sm:$0xff] %v1811
    %1828 = vst [vmem:[#allocation2 + $0x30] sm:$0xff] %v1812
    %1829 = vst [vmem:[#allocation2 + $0x38] sm:$0xff] %v1813
    %1830 = vst [vmem:[#allocation2 + $0x40] sm:$0xff] %v1814
    %1831 = vst [vmem:[#allocation2 + $0x48] sm:$0xff] %v1815
    %1832 = vst [vmem:[#allocation2 + $0x50] sm:$0xff] %v1816
    %1833 = vst [vmem:[#allocation2 + $0x58] sm:$0xff] %v1817
    %1834 = vst [vmem:[#allocation2 + $0x60] sm:$0xff] %v1818
    %1835 = vst [vmem:[#allocation2 + $0x68] sm:$0xff] %v1819
    %1836 = vst [vmem:[#allocation2 + $0x70] sm:$0xff] %v1820
    %1837 = vst [vmem:[#allocation2 + $0x78] sm:$0xff] %v1821
    // Predicated region
    $region34: #{tpu_custom_call.1} parent=1 // pred_check
      _
    $region35: #{tpu_custom_call.1} parent=1 // pred_check_branch
      %1839 = sbr.rel (0) target = $region37
    $region36: #{tpu_custom_call.1} parent=1 // pred_region
      %1841 = vsyncadd [#allocation3], 0
      %s1842 = sshll.u32 [#allocation2], 4
      %s1843 = int_to_ptr.vmem [resolvable:$true] %s1842
      %s1844 = sshll.u32 %s8, 4
      %s1845 = int_to_ptr.hbm [resolvable:$true] %s1844
      %1850 = dma.vmem_to_hbm [thread:$0]  %s1843, 2048, %s1845, [#allocation3], 512, 512, 32
    $region37: #{tpu_custom_call.1} parent=1 // pred_fallthru
      _
    // Predicated region
    $region38: #{tpu_custom_call.1} parent=1 // pred_check
      _
    $region39: #{tpu_custom_call.1} parent=1 // pred_check_branch
      %1852 = sbr.rel (0) target = $region41
    $region40: #{tpu_custom_call.1} parent=1 // pred_region
      %1854 = dma.done [#allocation3], 2048
    $region41: #{tpu_custom_call.1} parent=1 // pred_fallthru
      _
    %1855 = vsyncpa [#allocation3], 1

</llo_original>
